<compile_context>
chip_gen: v5e
topology: v5e:2x2
jax: 0.10.0
libtpu: 0.0.40
codegen_flags: <defaults>
</compile_context>

<pallas_src>
import math
from functools import partial

import jax
import jax.numpy as jnp
from jax import lax
from jax.experimental import pallas as pl
from jax.experimental.pallas import tpu as pltpu

_SQRT1_2 = 1.0 / math.sqrt(2.0)


def _round_up(a, b):
    return -(-a // b) * b


def _layernorm(x, gamma, beta, eps=1e-5):
    # PyTorch nn.LayerNorm over the last dim, biased variance, eps=1e-5. gamma/beta: (1, C).
    mu = jnp.mean(x, axis=-1, keepdims=True)
    xc = x - mu
    var = jnp.mean(xc * xc, axis=-1, keepdims=True)
    return xc * lax.rsqrt(var + eps) * gamma + beta


def _gelu_exact(x):
    # nn.GELU() default = exact erf-based GELU (kept in f32).
    return 0.5 * x * (1.0 + lax.erf(x * _SQRT1_2))


# --------------------------------------------------------------------------------------
# Kernel 1: LN1 + fused QKV projection (lane-dense, full MXU depth/width).
# --------------------------------------------------------------------------------------
def _qkv_kernel(x_ref, ln1w_ref, ln1b_ref, wqkv_ref, qkv_ref):
    x = x_ref[0].astype(jnp.float32)                                 # (T, C)
    xn = _layernorm(x, ln1w_ref[...], ln1b_ref[...])
    qkv_ref[0] = jnp.dot(xn.astype(jnp.bfloat16), wqkv_ref[...],
                         preferred_element_type=jnp.float32).astype(qkv_ref.dtype)


# --------------------------------------------------------------------------------------
# Kernel 2: head-batched attention core (scores, masked softmax, PV), normalization after PV.
# --------------------------------------------------------------------------------------
def _attn_kernel(q_ref, kt_ref, v_ref, ctx_ref, *, n_valid):
    q = q_ref[0]                                                     # (H, T, hd)  bf16
    kt = kt_ref[0]                                                   # (H, hd, Np) bf16 (lane-dense)
    v = v_ref[0]                                                     # (H, Np, hd) bf16
    s = jnp.einsum("htd,hdk->htk", q, kt,
                   preferred_element_type=jnp.float32)               # (H, T, Np) f32
    n_pad = s.shape[-1]
    if n_valid < n_pad:                                              # static key-padding mask
        col = lax.broadcasted_iota(jnp.int32, s.shape, 2)
        s = jnp.where(col < n_valid, s, -1e30)
    s = s - jnp.max(s, axis=-1, keepdims=True)
    p = jnp.exp(s)
    denom = jnp.sum(p, axis=-1, keepdims=True)                       # (H, T, 1)
    o = jnp.einsum("htk,hkd->htd", p.astype(jnp.bfloat16), v,
                   preferred_element_type=jnp.float32)               # (H, T, hd)
    o = o * pl.reciprocal(denom, approx=True)                        # normalize AFTER PV
    ctx_ref[0] = o.astype(ctx_ref.dtype)


# --------------------------------------------------------------------------------------
# Kernel 3: output projection + residual + LN2 + MLP(GELU) + residual (all lane-dense).
# --------------------------------------------------------------------------------------
def _proj_mlp_kernel(x_ref, ctx_ref, wp_ref, bp_ref, ln2w_ref, ln2b_ref,
                     w1_ref, b1_ref, w2_ref, b2_ref, o_ref):
    x = x_ref[0].astype(jnp.float32)                                 # (T, C)
    attn = jnp.dot(ctx_ref[0], wp_ref[...],
                   preferred_element_type=jnp.float32) + bp_ref[...] # full-depth (T,C)@(C,C)
    y = x + attn                                                     # residual 1
    yn = _layernorm(y, ln2w_ref[...], ln2b_ref[...])
    h = jnp.dot(yn.astype(jnp.bfloat16), w1_ref[...],
                preferred_element_type=jnp.float32) + b1_ref[...]
    h = _gelu_exact(h)
    mlp = jnp.dot(h.astype(jnp.bfloat16), w2_ref[...],
                  preferred_element_type=jnp.float32) + b2_ref[...]
    o_ref[0] = (y + mlp).astype(o_ref.dtype)                         # residual 2


# --------------------------------------------------------------------------------------
# Host-side helpers.
# --------------------------------------------------------------------------------------
def _vmem_capacity_bytes():
    try:
        return int(pltpu.get_tpu_info().vmem_capacity_bytes)
    except Exception:
        return 64 * 1024 * 1024  # conservative fallback (v7x per-TC VMEM)


def _wspec(shape):
    # Constant-index weight block: never re-fetched -> single buffer (halves VMEM residency).
    nd = len(shape)
    return pl.BlockSpec(shape, lambda b, r, _nd=nd: (0,) * _nd,
                        pipeline_mode=pl.Buffered(1))


def _pick_row_tile(N, C, H, hd, Mh, capacity):
    """VMEM-aware row tile: largest tile whose per-iteration live data fits the budget."""
    budget = int(0.55 * capacity)
    cap = _round_up(max(N, 8), 8)
    hd_l = max(hd, 128)                       # lane padding of head-dim VMEM blocks
    w_mlp = (C * C + 2 * C * Mh) * 2          # resident bf16 weights of the proj+MLP kernel
    for t in (512, 256, 128, 64, 32, 16, 8):
        if t > cap:
            continue
        n_pad = _round_up(N, t)
        # attention kernel: f32 scores + exp + bf16 probs, q/ctx tiles (x2 buf), full K/V (x2 buf)
        k_attn = (3 * H * t * n_pad * 4
                  + 2 * (2 * H * t * hd_l * 2)
                  + 2 * (H * hd * n_pad * 2 + H * n_pad * hd_l * 2))
        # proj+MLP kernel: MLP hidden f32 (+gelu), a few (t, C) f32 copies, weights, io tiles
        k_mlp = 2 * t * Mh * 4 + 8 * t * C * 4 + w_mlp + 2 * (2 * t * C * 4)
        if max(k_attn, k_mlp) <= budget:
            return t
    return 8


def vit_block(x, params, *, num_heads, row_tile=None):
    B, N, C = x.shape
    assert C % num_heads == 0
    H = num_heads
    hd = C // H
    scale = hd ** (-0.5)
    Mh = params["w1"].shape[1]

    f32, bf16 = jnp.float32, jnp.bfloat16
    capacity = _vmem_capacity_bytes()
    vmem_limit = int(0.78 * capacity)          # per-generation: ~50 MiB v7x, ~100 MiB v5e/v6e

    if row_tile is None:
        row_tile = _pick_row_tile(N, C, H, hd, Mh, capacity)
    row_tile = max(8, _round_up(row_tile, 8))
    n_pad = _round_up(N, row_tile)
    R = n_pad // row_tile

    # Host-side weight prep: fused QKV weight stays (C, 3C) (lane-dense matmul); fold the
    # softmax scale into the Q columns; matmul weights in bf16, LN params / biases in f32.
    wqkv = params["wqkv"].astype(f32)
    wqkv = jnp.concatenate([wqkv[:, :C] * scale, wqkv[:, C:]], axis=1).astype(bf16)
    wp = params["wproj"].astype(bf16)                                # (C, C)
    w1 = params["w1"].astype(bf16)                                   # (C, Mh)
    w2 = params["w2"].astype(bf16)                                   # (Mh, C)
    ln1_w = params["ln1_w"].astype(f32); ln1_b = params["ln1_b"].astype(f32)
    ln2_w = params["ln2_w"].astype(f32); ln2_b = params["ln2_b"].astype(f32)
    bp = params["bproj"].astype(f32); b1 = params["b1"].astype(f32); b2 = params["b2"].astype(f32)

    # Pad the sequence to a multiple of the row tile; pad keys are masked in the attention kernel.
    x_p = x if n_pad == N else jnp.pad(x, ((0, 0), (0, n_pad - N), (0, 0)))

    cparams = pltpu.CompilerParams(
        dimension_semantics=("parallel", "parallel"),
        vmem_limit_bytes=vmem_limit,
    )

    # ---- phase 1: LN1 + fused QKV projection --------------------------------------------
    qkv = pl.pallas_call(
        _qkv_kernel,
        out_shape=jax.ShapeDtypeStruct((B, n_pad, 3 * C), bf16),
        grid=(B, R),
        in_specs=[
            pl.BlockSpec((1, row_tile, C), lambda b, r: (b, r, 0)),
            _wspec((1, C)), _wspec((1, C)), _wspec((C, 3 * C)),
        ],
        out_specs=pl.BlockSpec((1, row_tile, 3 * C), lambda b, r: (b, r, 0)),
        compiler_params=cparams,
    )(x_p, ln1_w, ln1_b, wqkv)

    # Head-major relayout in HBM via XLA (cheap); K is stored transposed so its VMEM block
    # is lane-dense (last dim = sequence), avoiding hd=64 lane padding for the big buffer.
    qkv = qkv.reshape(B, n_pad, 3, H, hd)
    q = qkv[:, :, 0].transpose(0, 2, 1, 3)         # (B, H, Np, hd)
    kt = qkv[:, :, 1].transpose(0, 2, 3, 1)        # (B, H, hd, Np)
    v = qkv[:, :, 2].transpose(0, 2, 1, 3)         # (B, H, Np, hd)

    # ---- phase 2: attention core ---------------------------------------------------------
    ctx = pl.pallas_call(
        partial(_attn_kernel, n_valid=N),
        out_shape=jax.ShapeDtypeStruct((B, H, n_pad, hd), bf16),
        grid=(B, R),
        in_specs=[
            pl.BlockSpec((1, H, row_tile, hd), lambda b, r: (b, 0, r, 0)),
            pl.BlockSpec((1, H, hd, n_pad), lambda b, r: (b, 0, 0, 0)),
            pl.BlockSpec((1, H, n_pad, hd), lambda b, r: (b, 0, 0, 0)),
        ],
        out_specs=pl.BlockSpec((1, H, row_tile, hd), lambda b, r: (b, 0, r, 0)),
        compiler_params=cparams,
    )(q, kt, v)

    # Lane-dense (B, Np, C) context so the output projection is one full-depth matmul.
    ctx = ctx.transpose(0, 2, 1, 3).reshape(B, n_pad, C)

    # ---- phase 3: projection + residual + LN2 + MLP + residual ---------------------------
    out = pl.pallas_call(
        _proj_mlp_kernel,
        out_shape=jax.ShapeDtypeStruct((B, n_pad, C), x.dtype),
        grid=(B, R),
        in_specs=[
            pl.BlockSpec((1, row_tile, C), lambda b, r: (b, r, 0)),   # x (residual 1)
            pl.BlockSpec((1, row_tile, C), lambda b, r: (b, r, 0)),   # attention context
            _wspec((C, C)), _wspec((1, C)),                           # proj w, b
            _wspec((1, C)), _wspec((1, C)),                           # ln2 w, b
            _wspec((C, Mh)), _wspec((1, Mh)),                         # fc1 w, b
            _wspec((Mh, C)), _wspec((1, C)),                          # fc2 w, b
        ],
        out_specs=pl.BlockSpec((1, row_tile, C), lambda b, r: (b, r, 0)),
        compiler_params=cparams,
    )(x_p, ctx, wp, bp, ln2_w, ln2_b, w1, b1, w2, b2)

    return out if n_pad == N else out[:, :N, :]


# --------------------------------------------------------------------------------------
# Parameter init + pure-JAX f32 reference (mirrors the PyTorch Block in eval mode).
# --------------------------------------------------------------------------------------
def init_params(key, dim, num_heads, mlp_ratio=4.0):
    hidden = int(dim * mlp_ratio)
    ks = jax.random.split(key, 8)
    s = 0.02
    # weights stored as [in, out] so the block computes x @ W + b (qkv_bias=False)
    return {
        "ln1_w": jnp.ones((1, dim), jnp.float32),
        "ln1_b": jnp.zeros((1, dim), jnp.float32),
        "wqkv": s * jax.random.normal(ks[0], (dim, 3 * dim), jnp.float32),
        "wproj": s * jax.random.normal(ks[1], (dim, dim), jnp.float32),
        "bproj": s * jax.random.normal(ks[2], (1, dim), jnp.float32),
        "ln2_w": jnp.ones((1, dim), jnp.float32),
        "ln2_b": jnp.zeros((1, dim), jnp.float32),
        "w1": s * jax.random.normal(ks[3], (dim, hidden), jnp.float32),
        "b1": s * jax.random.normal(ks[4], (1, hidden), jnp.float32),
        "w2": s * jax.random.normal(ks[5], (hidden, dim), jnp.float32),
        "b2": s * jax.random.normal(ks[6], (1, dim), jnp.float32),
    }


def ref_block(x, params, num_heads):
    B, N, C = x.shape
    hd = C // num_heads
    scale = hd ** (-0.5)

    def ln(z, w, b):
        mu = jnp.mean(z, axis=-1, keepdims=True)
        var = jnp.mean((z - mu) ** 2, axis=-1, keepdims=True)
        return (z - mu) / jnp.sqrt(var + 1e-5) * w + b

    xn = ln(x, params["ln1_w"][0], params["ln1_b"][0])
    qkv = xn @ params["wqkv"]
    qkv = qkv.reshape(B, N, 3, num_heads, hd).transpose(2, 0, 3, 1, 4)
    q, k, v = qkv[0], qkv[1], qkv[2]
    s = jnp.einsum("bhqd,bhkd->bhqk", q, k) * scale
    p = jax.nn.softmax(s, axis=-1)
    o = jnp.einsum("bhqk,bhkd->bhqd", p, v)
    o = o.transpose(0, 2, 1, 3).reshape(B, N, C)
    o = o @ params["wproj"] + params["bproj"][0]
    x = x + o
    yn = ln(x, params["ln2_w"][0], params["ln2_b"][0])
    h = yn @ params["w1"] + params["b1"][0]
    h = 0.5 * h * (1.0 + lax.erf(h * _SQRT1_2))
    return x + h @ params["w2"] + params["b2"][0]


if __name__ == "__main__":
    # Small shapes; N=12 with row_tile=8 exercises sequence padding + the key-padding mask
    # and gives 2 row tiles per image (multi-tile pipelining path).
    B, N, C = 2, 12, 32
    num_heads = 4

    key = jax.random.PRNGKey(0)
    kx, kp = jax.random.split(key)
    x = jax.random.normal(kx, (B, N, C), jnp.float32)
    params = init_params(kp, C, num_heads)

    fwd = jax.jit(partial(vit_block, num_heads=num_heads, row_tile=8))
    out = fwd(x, params)
    jax.block_until_ready(out)
    assert out.shape == (B, N, C)

    ref = ref_block(x, params, num_heads)
    err = float(jnp.max(jnp.abs(out - ref)))
    assert err < 5e-2, f"max abs err vs f32 reference: {err}"
    print("KERNEL_OK")
</pallas_src>

<mosaic_0001>
module attributes {stable_mosaic.version = 11 : i64} {
  func.func @_qkv_kernel(%arg0: i32, %arg1: i32, %arg2: memref<1x8x32xf32, #tpu.memory_space<vmem>>, %arg3: memref<1x32xf32, #tpu.memory_space<vmem>>, %arg4: memref<1x32xf32, #tpu.memory_space<vmem>>, %arg5: memref<32x96xbf16, #tpu.memory_space<vmem>>, %arg6: memref<1x8x96xbf16, #tpu.memory_space<vmem>>) attributes {dimension_semantics = [#tpu.dimension_semantics<parallel>, #tpu.dimension_semantics<parallel>], iteration_bounds = array<i64: 2, 2>, scalar_prefetch = 0 : i64, scratch_operands = 0 : i64, tpu.core_type = #tpu.core_type<tc>, window_params = [{transform_indices = @transform_0, window_bounds = array<i64: 1, 8, 32>}, {pipeline_mode = #tpu.pipeline_mode<synchronous>, transform_indices = @transform_1, window_bounds = array<i64: 1, 32>}, {pipeline_mode = #tpu.pipeline_mode<synchronous>, transform_indices = @transform_2, window_bounds = array<i64: 1, 32>}, {pipeline_mode = #tpu.pipeline_mode<synchronous>, transform_indices = @transform_3, window_bounds = array<i64: 32, 96>}, {transform_indices = @transform_4, window_bounds = array<i64: 1, 8, 96>}]} {
    %c0 = arith.constant 0 : index
    %c0_0 = arith.constant 0 : index
    %c0_1 = arith.constant 0 : index
    %0 = vector.load %arg2[%c0, %c0_0, %c0_1] : memref<1x8x32xf32, #tpu.memory_space<vmem>>, vector<1x8x32xf32>
    %1 = vector.shape_cast %0 : vector<1x8x32xf32> to vector<8x32xf32>
    %c0_2 = arith.constant 0 : index
    %c0_3 = arith.constant 0 : index
    %2 = vector.load %arg3[%c0_2, %c0_3] : memref<1x32xf32, #tpu.memory_space<vmem>>, vector<1x32xf32>
    %c0_4 = arith.constant 0 : index
    %c0_5 = arith.constant 0 : index
    %3 = vector.load %arg4[%c0_4, %c0_5] : memref<1x32xf32, #tpu.memory_space<vmem>>, vector<1x32xf32>
    %cst = arith.constant dense<0.000000e+00> : vector<8xf32>
    %4 = vector.multi_reduction <add>, %1, %cst [1] : vector<8x32xf32> to vector<8xf32>
    %5 = vector.shape_cast %4 : vector<8xf32> to vector<8x1xf32>
    %cst_6 = arith.constant 3.200000e+01 : f32
    %6 = vector.broadcast %cst_6 : f32 to vector<8x1xf32>
    %7 = arith.divf %5, %6 : vector<8x1xf32>
    %8 = vector.broadcast %7 : vector<8x1xf32> to vector<8x32xf32>
    %9 = arith.subf %1, %8 : vector<8x32xf32>
    %10 = arith.mulf %9, %9 : vector<8x32xf32>
    %cst_7 = arith.constant dense<0.000000e+00> : vector<8xf32>
    %11 = vector.multi_reduction <add>, %10, %cst_7 [1] : vector<8x32xf32> to vector<8xf32>
    %12 = vector.shape_cast %11 : vector<8xf32> to vector<8x1xf32>
    %cst_8 = arith.constant 3.200000e+01 : f32
    %13 = vector.broadcast %cst_8 : f32 to vector<8x1xf32>
    %14 = arith.divf %12, %13 : vector<8x1xf32>
    %cst_9 = arith.constant 9.99999974E-6 : f32
    %15 = vector.broadcast %cst_9 : f32 to vector<8x1xf32>
    %16 = arith.addf %14, %15 : vector<8x1xf32>
    %17 = math.rsqrt %16 : vector<8x1xf32>
    %18 = vector.broadcast %17 : vector<8x1xf32> to vector<8x32xf32>
    %19 = arith.mulf %9, %18 : vector<8x32xf32>
    %20 = vector.broadcast %2 : vector<1x32xf32> to vector<8x32xf32>
    %21 = arith.mulf %19, %20 : vector<8x32xf32>
    %22 = vector.broadcast %3 : vector<1x32xf32> to vector<8x32xf32>
    %23 = arith.addf %21, %22 : vector<8x32xf32>
    %24 = arith.truncf %23 : vector<8x32xf32> to vector<8x32xbf16>
    %c0_10 = arith.constant 0 : index
    %c0_11 = arith.constant 0 : index
    %25 = vector.load %arg5[%c0_10, %c0_11] : memref<32x96xbf16, #tpu.memory_space<vmem>>, vector<32x96xbf16>
    %cst_12 = arith.constant dense<0.000000e+00> : vector<8x96xf32>
    %26 = tpu.matmul %24, %25, %cst_12 {dimension_numbers = #tpu.dot_dimension_numbers<[1], [0], [0], [1], [0, 0, 1, 1], [], []>} : vector<8x32xbf16>, vector<32x96xbf16>, vector<8x96xf32> -> vector<8x96xf32>
    %27 = arith.truncf %26 : vector<8x96xf32> to vector<8x96xbf16>
    %c0_13 = arith.constant 0 : index
    %c0_14 = arith.constant 0 : index
    %c0_15 = arith.constant 0 : index
    %28 = vector.load %arg6[%c0_13, %c0_14, %c0_15] : memref<1x8x96xbf16, #tpu.memory_space<vmem>>, vector<1x8x96xbf16>
    %29 = vector.shape_cast %28 : vector<1x8x96xbf16> to vector<8x96xbf16>
    %30 = vector.shape_cast %27 : vector<8x96xbf16> to vector<1x8x96xbf16>
    tpu.vector_store %arg6[%c0_13, %c0_14, %c0_15], %30 {strides = array<i32>} : memref<1x8x96xbf16, #tpu.memory_space<vmem>>, vector<1x8x96xbf16>,
    return
  }
  func.func @transform_0(%arg0: i32, %arg1: i32) -> (i32, i32, i32) {
    %c0_i32 = arith.constant 0 : i32
    %c0_i32_0 = arith.constant 0 : i32
    return %arg0, %arg1, %c0_i32 : i32, i32, i32
  }
  func.func @transform_1(%arg0: i32, %arg1: i32) -> (i32, i32) {
    %c0_i32 = arith.constant 0 : i32
    %c0_i32_0 = arith.constant 0 : i32
    %c0_i32_1 = arith.constant 0 : i32
    return %c0_i32, %c0_i32_0 : i32, i32
  }
  func.func @transform_2(%arg0: i32, %arg1: i32) -> (i32, i32) {
    %c0_i32 = arith.constant 0 : i32
    %c0_i32_0 = arith.constant 0 : i32
    %c0_i32_1 = arith.constant 0 : i32
    return %c0_i32, %c0_i32_0 : i32, i32
  }
  func.func @transform_3(%arg0: i32, %arg1: i32) -> (i32, i32) {
    %c0_i32 = arith.constant 0 : i32
    %c0_i32_0 = arith.constant 0 : i32
    %c0_i32_1 = arith.constant 0 : i32
    return %c0_i32, %c0_i32_0 : i32, i32
  }
  func.func @transform_4(%arg0: i32, %arg1: i32) -> (i32, i32, i32) {
    %c0_i32 = arith.constant 0 : i32
    %c0_i32_0 = arith.constant 0 : i32
    return %arg0, %arg1, %c0_i32 : i32, i32, i32
  }
}

module attributes {stable_mosaic.version = 11 : i64} {
  func.func @_attn_kernel(%arg0: i32, %arg1: i32, %arg2: memref<1x4x8x8xbf16, #tpu.memory_space<vmem>>, %arg3: memref<1x4x8x16xbf16, #tpu.memory_space<vmem>>, %arg4: memref<1x4x16x8xbf16, #tpu.memory_space<vmem>>, %arg5: memref<1x4x8x8xbf16, #tpu.memory_space<vmem>>) attributes {dimension_semantics = [#tpu.dimension_semantics<parallel>, #tpu.dimension_semantics<parallel>], iteration_bounds = array<i64: 2, 2>, scalar_prefetch = 0 : i64, scratch_operands = 0 : i64, tpu.core_type = #tpu.core_type<tc>, window_params = [{transform_indices = @transform_0, window_bounds = array<i64: 1, 4, 8, 8>}, {transform_indices = @transform_1, window_bounds = array<i64: 1, 4, 8, 16>}, {transform_indices = @transform_2, window_bounds = array<i64: 1, 4, 16, 8>}, {transform_indices = @transform_3, window_bounds = array<i64: 1, 4, 8, 8>}]} {
    %c0 = arith.constant 0 : index
    %c0_0 = arith.constant 0 : index
    %c0_1 = arith.constant 0 : index
    %c0_2 = arith.constant 0 : index
    %0 = vector.load %arg2[%c0, %c0_0, %c0_1, %c0_2] : memref<1x4x8x8xbf16, #tpu.memory_space<vmem>>, vector<1x4x8x8xbf16>
    %1 = vector.shape_cast %0 : vector<1x4x8x8xbf16> to vector<4x8x8xbf16>
    %c0_3 = arith.constant 0 : index
    %c0_4 = arith.constant 0 : index
    %c0_5 = arith.constant 0 : index
    %c0_6 = arith.constant 0 : index
    %2 = vector.load %arg3[%c0_3, %c0_4, %c0_5, %c0_6] : memref<1x4x8x16xbf16, #tpu.memory_space<vmem>>, vector<1x4x8x16xbf16>
    %3 = vector.shape_cast %2 : vector<1x4x8x16xbf16> to vector<4x8x16xbf16>
    %c0_7 = arith.constant 0 : index
    %c0_8 = arith.constant 0 : index
    %c0_9 = arith.constant 0 : index
    %c0_10 = arith.constant 0 : index
    %4 = vector.load %arg4[%c0_7, %c0_8, %c0_9, %c0_10] : memref<1x4x16x8xbf16, #tpu.memory_space<vmem>>, vector<1x4x16x8xbf16>
    %5 = vector.shape_cast %4 : vector<1x4x16x8xbf16> to vector<4x16x8xbf16>
    "tpu.trace_start"() <{level = 10 : i32, message = "htd,hdk->htk"}> : () -> ()
    %cst = arith.constant dense<0.000000e+00> : vector<4x8x16xf32>
    %6 = tpu.matmul %1, %3, %cst {dimension_numbers = #tpu.dot_dimension_numbers<[2], [1], [1], [2], [0, 0, 0, 1, 1, 2], [0], [0]>} : vector<4x8x8xbf16>, vector<4x8x16xbf16>, vector<4x8x16xf32> -> vector<4x8x16xf32>
    "tpu.trace_stop"() : () -> ()
    %7 = tpu.iota {dimensions = array<i32: 2>} : vector<4x8x16xi32>
    %c12_i32 = arith.constant 12 : i32
    %8 = vector.broadcast %c12_i32 : i32 to vector<4x8x16xi32>
    %9 = arith.cmpi slt, %7, %8 : vector<4x8x16xi32>
    %cst_11 = arith.constant -1.000000e+30 : f32
    %10 = vector.broadcast %cst_11 : f32 to vector<4x8x16xf32>
    %11 = arith.select %9, %6, %10 : vector<4x8x16xi1>, vector<4x8x16xf32>
    %cst_12 = arith.constant dense<0xFF800000> : vector<4x8xf32>
    %12 = vector.multi_reduction <maximumf>, %11, %cst_12 [2] : vector<4x8x16xf32> to vector<4x8xf32>
    %13 = vector.shape_cast %12 : vector<4x8xf32> to vector<4x8x1xf32>
    %14 = vector.broadcast %13 : vector<4x8x1xf32> to vector<4x8x16xf32>
    %15 = arith.subf %11, %14 : vector<4x8x16xf32>
    %16 = math.exp %15 : vector<4x8x16xf32>
    %cst_13 = arith.constant dense<0.000000e+00> : vector<4x8xf32>
    %17 = vector.multi_reduction <add>, %16, %cst_13 [2] : vector<4x8x16xf32> to vector<4x8xf32>
    %18 = vector.shape_cast %17 : vector<4x8xf32> to vector<4x8x1xf32>
    %19 = arith.truncf %16 : vector<4x8x16xf32> to vector<4x8x16xbf16>
    "tpu.trace_start"() <{level = 10 : i32, message = "htk,hkd->htd"}> : () -> ()
    %cst_14 = arith.constant dense<0.000000e+00> : vector<4x8x8xf32>
    %20 = tpu.matmul %19, %5, %cst_14 {dimension_numbers = #tpu.dot_dimension_numbers<[2], [1], [1], [2], [0, 0, 0, 1, 1, 2], [0], [0]>} : vector<4x8x16xbf16>, vector<4x16x8xbf16>, vector<4x8x8xf32> -> vector<4x8x8xf32>
    "tpu.trace_stop"() : () -> ()
    %21 = tpu.reciprocal %18 {approx = true} : vector<4x8x1xf32> -> vector<4x8x1xf32>
    %22 = vector.broadcast %21 : vector<4x8x1xf32> to vector<4x8x8xf32>
    %23 = arith.mulf %20, %22 : vector<4x8x8xf32>
    %24 = arith.truncf %23 : vector<4x8x8xf32> to vector<4x8x8xbf16>
    %c0_15 = arith.constant 0 : index
    %c0_16 = arith.constant 0 : index
    %c0_17 = arith.constant 0 : index
    %c0_18 = arith.constant 0 : index
    %25 = vector.load %arg5[%c0_15, %c0_16, %c0_17, %c0_18] : memref<1x4x8x8xbf16, #tpu.memory_space<vmem>>, vector<1x4x8x8xbf16>
    %26 = vector.shape_cast %25 : vector<1x4x8x8xbf16> to vector<4x8x8xbf16>
    %27 = vector.shape_cast %24 : vector<4x8x8xbf16> to vector<1x4x8x8xbf16>
    tpu.vector_store %arg5[%c0_15, %c0_16, %c0_17, %c0_18], %27 {strides = array<i32>} : memref<1x4x8x8xbf16, #tpu.memory_space<vmem>>, vector<1x4x8x8xbf16>,
    return
  }
  func.func @transform_0(%arg0: i32, %arg1: i32) -> (i32, i32, i32, i32) {
    %c0_i32 = arith.constant 0 : i32
    %c0_i32_0 = arith.constant 0 : i32
    %c0_i32_1 = arith.constant 0 : i32
    return %arg0, %c0_i32, %arg1, %c0_i32_0 : i32, i32, i32, i32
  }
  func.func @transform_1(%arg0: i32, %arg1: i32) -> (i32, i32, i32, i32) {
    %c0_i32 = arith.constant 0 : i32
    %c0_i32_0 = arith.constant 0 : i32
    %c0_i32_1 = arith.constant 0 : i32
    %c0_i32_2 = arith.constant 0 : i32
    return %arg0, %c0_i32, %c0_i32_0, %c0_i32_1 : i32, i32, i32, i32
  }
  func.func @transform_2(%arg0: i32, %arg1: i32) -> (i32, i32, i32, i32) {
    %c0_i32 = arith.constant 0 : i32
    %c0_i32_0 = arith.constant 0 : i32
    %c0_i32_1 = arith.constant 0 : i32
    %c0_i32_2 = arith.constant 0 : i32
    return %arg0, %c0_i32, %c0_i32_0, %c0_i32_1 : i32, i32, i32, i32
  }
  func.func @transform_3(%arg0: i32, %arg1: i32) -> (i32, i32, i32, i32) {
    %c0_i32 = arith.constant 0 : i32
    %c0_i32_0 = arith.constant 0 : i32
    %c0_i32_1 = arith.constant 0 : i32
    return %arg0, %c0_i32, %arg1, %c0_i32_0 : i32, i32, i32, i32
  }
}

module attributes {stable_mosaic.version = 11 : i64} {
  func.func @_proj_mlp_kernel(%arg0: i32, %arg1: i32, %arg2: memref<1x8x32xf32, #tpu.memory_space<vmem>>, %arg3: memref<1x8x32xbf16, #tpu.memory_space<vmem>>, %arg4: memref<32x32xbf16, #tpu.memory_space<vmem>>, %arg5: memref<1x32xf32, #tpu.memory_space<vmem>>, %arg6: memref<1x32xf32, #tpu.memory_space<vmem>>, %arg7: memref<1x32xf32, #tpu.memory_space<vmem>>, %arg8: memref<32x128xbf16, #tpu.memory_space<vmem>>, %arg9: memref<1x128xf32, #tpu.memory_space<vmem>>, %arg10: memref<128x32xbf16, #tpu.memory_space<vmem>>, %arg11: memref<1x32xf32, #tpu.memory_space<vmem>>, %arg12: memref<1x8x32xf32, #tpu.memory_space<vmem>>) attributes {dimension_semantics = [#tpu.dimension_semantics<parallel>, #tpu.dimension_semantics<parallel>], iteration_bounds = array<i64: 2, 2>, scalar_prefetch = 0 : i64, scratch_operands = 0 : i64, tpu.core_type = #tpu.core_type<tc>, window_params = [{transform_indices = @transform_0, window_bounds = array<i64: 1, 8, 32>}, {transform_indices = @transform_1, window_bounds = array<i64: 1, 8, 32>}, {pipeline_mode = #tpu.pipeline_mode<synchronous>, transform_indices = @transform_2, window_bounds = array<i64: 32, 32>}, {pipeline_mode = #tpu.pipeline_mode<synchronous>, transform_indices = @transform_3, window_bounds = array<i64: 1, 32>}, {pipeline_mode = #tpu.pipeline_mode<synchronous>, transform_indices = @transform_4, window_bounds = array<i64: 1, 32>}, {pipeline_mode = #tpu.pipeline_mode<synchronous>, transform_indices = @transform_5, window_bounds = array<i64: 1, 32>}, {pipeline_mode = #tpu.pipeline_mode<synchronous>, transform_indices = @transform_6, window_bounds = array<i64: 32, 128>}, {pipeline_mode = #tpu.pipeline_mode<synchronous>, transform_indices = @transform_7, window_bounds = array<i64: 1, 128>}, {pipeline_mode = #tpu.pipeline_mode<synchronous>, transform_indices = @transform_8, window_bounds = array<i64: 128, 32>}, {pipeline_mode = #tpu.pipeline_mode<synchronous>, transform_indices = @transform_9, window_bounds = array<i64: 1, 32>}, {transform_indices = @transform_10, window_bounds = array<i64: 1, 8, 32>}]} {
    %c0 = arith.constant 0 : index
    %c0_0 = arith.constant 0 : index
    %c0_1 = arith.constant 0 : index
    %0 = vector.load %arg2[%c0, %c0_0, %c0_1] : memref<1x8x32xf32, #tpu.memory_space<vmem>>, vector<1x8x32xf32>
    %1 = vector.shape_cast %0 : vector<1x8x32xf32> to vector<8x32xf32>
    %c0_2 = arith.constant 0 : index
    %c0_3 = arith.constant 0 : index
    %c0_4 = arith.constant 0 : index
    %2 = vector.load %arg3[%c0_2, %c0_3, %c0_4] : memref<1x8x32xbf16, #tpu.memory_space<vmem>>, vector<1x8x32xbf16>
    %3 = vector.shape_cast %2 : vector<1x8x32xbf16> to vector<8x32xbf16>
    %c0_5 = arith.constant 0 : index
    %c0_6 = arith.constant 0 : index
    %4 = vector.load %arg4[%c0_5, %c0_6] : memref<32x32xbf16, #tpu.memory_space<vmem>>, vector<32x32xbf16>
    %cst = arith.constant dense<0.000000e+00> : vector<8x32xf32>
    %5 = tpu.matmul %3, %4, %cst {dimension_numbers = #tpu.dot_dimension_numbers<[1], [0], [0], [1], [0, 0, 1, 1], [], []>} : vector<8x32xbf16>, vector<32x32xbf16>, vector<8x32xf32> -> vector<8x32xf32>
    %c0_7 = arith.constant 0 : index
    %c0_8 = arith.constant 0 : index
    %6 = vector.load %arg5[%c0_7, %c0_8] : memref<1x32xf32, #tpu.memory_space<vmem>>, vector<1x32xf32>
    %7 = vector.broadcast %6 : vector<1x32xf32> to vector<8x32xf32>
    %8 = arith.addf %5, %7 : vector<8x32xf32>
    %9 = arith.addf %1, %8 : vector<8x32xf32>
    %c0_9 = arith.constant 0 : index
    %c0_10 = arith.constant 0 : index
    %10 = vector.load %arg6[%c0_9, %c0_10] : memref<1x32xf32, #tpu.memory_space<vmem>>, vector<1x32xf32>
    %c0_11 = arith.constant 0 : index
    %c0_12 = arith.constant 0 : index
    %11 = vector.load %arg7[%c0_11, %c0_12] : memref<1x32xf32, #tpu.memory_space<vmem>>, vector<1x32xf32>
    %cst_13 = arith.constant dense<0.000000e+00> : vector<8xf32>
    %12 = vector.multi_reduction <add>, %9, %cst_13 [1] : vector<8x32xf32> to vector<8xf32>
    %13 = vector.shape_cast %12 : vector<8xf32> to vector<8x1xf32>
    %cst_14 = arith.constant 3.200000e+01 : f32
    %14 = vector.broadcast %cst_14 : f32 to vector<8x1xf32>
    %15 = arith.divf %13, %14 : vector<8x1xf32>
    %16 = vector.broadcast %15 : vector<8x1xf32> to vector<8x32xf32>
    %17 = arith.subf %9, %16 : vector<8x32xf32>
    %18 = arith.mulf %17, %17 : vector<8x32xf32>
    %cst_15 = arith.constant dense<0.000000e+00> : vector<8xf32>
    %19 = vector.multi_reduction <add>, %18, %cst_15 [1] : vector<8x32xf32> to vector<8xf32>
    %20 = vector.shape_cast %19 : vector<8xf32> to vector<8x1xf32>
    %cst_16 = arith.constant 3.200000e+01 : f32
    %21 = vector.broadcast %cst_16 : f32 to vector<8x1xf32>
    %22 = arith.divf %20, %21 : vector<8x1xf32>
    %cst_17 = arith.constant 9.99999974E-6 : f32
    %23 = vector.broadcast %cst_17 : f32 to vector<8x1xf32>
    %24 = arith.addf %22, %23 : vector<8x1xf32>
    %25 = math.rsqrt %24 : vector<8x1xf32>
    %26 = vector.broadcast %25 : vector<8x1xf32> to vector<8x32xf32>
    %27 = arith.mulf %17, %26 : vector<8x32xf32>
    %28 = vector.broadcast %10 : vector<1x32xf32> to vector<8x32xf32>
    %29 = arith.mulf %27, %28 : vector<8x32xf32>
    %30 = vector.broadcast %11 : vector<1x32xf32> to vector<8x32xf32>
    %31 = arith.addf %29, %30 : vector<8x32xf32>
    %32 = arith.truncf %31 : vector<8x32xf32> to vector<8x32xbf16>
    %c0_18 = arith.constant 0 : index
    %c0_19 = arith.constant 0 : index
    %33 = vector.load %arg8[%c0_18, %c0_19] : memref<32x128xbf16, #tpu.memory_space<vmem>>, vector<32x128xbf16>
    %cst_20 = arith.constant dense<0.000000e+00> : vector<8x128xf32>
    %34 = tpu.matmul %32, %33, %cst_20 {dimension_numbers = #tpu.dot_dimension_numbers<[1], [0], [0], [1], [0, 0, 1, 1], [], []>} : vector<8x32xbf16>, vector<32x128xbf16>, vector<8x128xf32> -> vector<8x128xf32>
    %c0_21 = arith.constant 0 : index
    %c0_22 = arith.constant 0 : index
    %35 = vector.load %arg9[%c0_21, %c0_22] : memref<1x128xf32, #tpu.memory_space<vmem>>, vector<1x128xf32>
    %36 = vector.broadcast %35 : vector<1x128xf32> to vector<8x128xf32>
    %37 = arith.addf %34, %36 : vector<8x128xf32>
    %cst_23 = arith.constant 5.000000e-01 : f32
    %38 = vector.broadcast %cst_23 : f32 to vector<8x128xf32>
    %39 = arith.mulf %38, %37 : vector<8x128xf32>
    %cst_24 = arith.constant 0.707106769 : f32
    %40 = vector.broadcast %cst_24 : f32 to vector<8x128xf32>
    %41 = arith.mulf %37, %40 : vector<8x128xf32>
    %42 = math.erf %41 : vector<8x128xf32>
    %cst_25 = arith.constant 1.000000e+00 : f32
    %43 = vector.broadcast %cst_25 : f32 to vector<8x128xf32>
    %44 = arith.addf %43, %42 : vector<8x128xf32>
    %45 = arith.mulf %39, %44 : vector<8x128xf32>
    %46 = arith.truncf %45 : vector<8x128xf32> to vector<8x128xbf16>
    %c0_26 = arith.constant 0 : index
    %c0_27 = arith.constant 0 : index
    %47 = vector.load %arg10[%c0_26, %c0_27] : memref<128x32xbf16, #tpu.memory_space<vmem>>, vector<128x32xbf16>
    %cst_28 = arith.constant dense<0.000000e+00> : vector<8x32xf32>
    %48 = tpu.matmul %46, %47, %cst_28 {dimension_numbers = #tpu.dot_dimension_numbers<[1], [0], [0], [1], [0, 0, 1, 1], [], []>} : vector<8x128xbf16>, vector<128x32xbf16>, vector<8x32xf32> -> vector<8x32xf32>
    %c0_29 = arith.constant 0 : index
    %c0_30 = arith.constant 0 : index
    %49 = vector.load %arg11[%c0_29, %c0_30] : memref<1x32xf32, #tpu.memory_space<vmem>>, vector<1x32xf32>
    %50 = vector.broadcast %49 : vector<1x32xf32> to vector<8x32xf32>
    %51 = arith.addf %48, %50 : vector<8x32xf32>
    %52 = arith.addf %9, %51 : vector<8x32xf32>
    %c0_31 = arith.constant 0 : index
    %c0_32 = arith.constant 0 : index
    %c0_33 = arith.constant 0 : index
    %53 = vector.load %arg12[%c0_31, %c0_32, %c0_33] : memref<1x8x32xf32, #tpu.memory_space<vmem>>, vector<1x8x32xf32>
    %54 = vector.shape_cast %53 : vector<1x8x32xf32> to vector<8x32xf32>
    %55 = vector.shape_cast %52 : vector<8x32xf32> to vector<1x8x32xf32>
    tpu.vector_store %arg12[%c0_31, %c0_32, %c0_33], %55 {strides = array<i32>} : memref<1x8x32xf32, #tpu.memory_space<vmem>>, vector<1x8x32xf32>,
    return
  }
  func.func @transform_0(%arg0: i32, %arg1: i32) -> (i32, i32, i32) {
    %c0_i32 = arith.constant 0 : i32
    %c0_i32_0 = arith.constant 0 : i32
    return %arg0, %arg1, %c0_i32 : i32, i32, i32
  }
  func.func @transform_1(%arg0: i32, %arg1: i32) -> (i32, i32, i32) {
    %c0_i32 = arith.constant 0 : i32
    %c0_i32_0 = arith.constant 0 : i32
    return %arg0, %arg1, %c0_i32 : i32, i32, i32
  }
  func.func @transform_2(%arg0: i32, %arg1: i32) -> (i32, i32) {
    %c0_i32 = arith.constant 0 : i32
    %c0_i32_0 = arith.constant 0 : i32
    %c0_i32_1 = arith.constant 0 : i32
    return %c0_i32, %c0_i32_0 : i32, i32
  }
  func.func @transform_3(%arg0: i32, %arg1: i32) -> (i32, i32) {
    %c0_i32 = arith.constant 0 : i32
    %c0_i32_0 = arith.constant 0 : i32
    %c0_i32_1 = arith.constant 0 : i32
    return %c0_i32, %c0_i32_0 : i32, i32
  }
  func.func @transform_4(%arg0: i32, %arg1: i32) -> (i32, i32) {
    %c0_i32 = arith.constant 0 : i32
    %c0_i32_0 = arith.constant 0 : i32
    %c0_i32_1 = arith.constant 0 : i32
    return %c0_i32, %c0_i32_0 : i32, i32
  }
  func.func @transform_5(%arg0: i32, %arg1: i32) -> (i32, i32) {
    %c0_i32 = arith.constant 0 : i32
    %c0_i32_0 = arith.constant 0 : i32
    %c0_i32_1 = arith.constant 0 : i32
    return %c0_i32, %c0_i32_0 : i32, i32
  }
  func.func @transform_6(%arg0: i32, %arg1: i32) -> (i32, i32) {
    %c0_i32 = arith.constant 0 : i32
    %c0_i32_0 = arith.constant 0 : i32
    %c0_i32_1 = arith.constant 0 : i32
    return %c0_i32, %c0_i32_0 : i32, i32
  }
  func.func @transform_7(%arg0: i32, %arg1: i32) -> (i32, i32) {
    %c0_i32 = arith.constant 0 : i32
    %c0_i32_0 = arith.constant 0 : i32
    %c0_i32_1 = arith.constant 0 : i32
    return %c0_i32, %c0_i32_0 : i32, i32
  }
  func.func @transform_8(%arg0: i32, %arg1: i32) -> (i32, i32) {
    %c0_i32 = arith.constant 0 : i32
    %c0_i32_0 = arith.constant 0 : i32
    %c0_i32_1 = arith.constant 0 : i32
    return %c0_i32, %c0_i32_0 : i32, i32
  }
  func.func @transform_9(%arg0: i32, %arg1: i32) -> (i32, i32) {
    %c0_i32 = arith.constant 0 : i32
    %c0_i32_0 = arith.constant 0 : i32
    %c0_i32_1 = arith.constant 0 : i32
    return %c0_i32, %c0_i32_0 : i32, i32
  }
  func.func @transform_10(%arg0: i32, %arg1: i32) -> (i32, i32, i32) {
    %c0_i32 = arith.constant 0 : i32
    %c0_i32_0 = arith.constant 0 : i32
    return %arg0, %arg1, %c0_i32 : i32, i32, i32
  }
}

</mosaic_0001>

<llo_original>
// kernel: vit_block.3
$region0: #{vit_block.3}
  #allocation0 [shape = 'u32[]', space=smem, size = 0x4, offset = 0x4, fixed_abs, tag = 'smem constant byte address 0x4 - core index']
  #allocation1 [shape = 'u32[72,128]{1,0:T(1,128)}', space=vmem, size = 0x9000, scoped, tag = 'internal scratch']
  %s0 = inlined_call_operand.vmem [shape: f32[2,16,32], index: 0, kind: input, shape index: {}]
  %s1 = inlined_call_operand.vmem [shape: f32[1,32], index: 1, kind: input, shape index: {}]
  %s2 = inlined_call_operand.vmem [shape: f32[1,32], index: 2, kind: input, shape index: {}]
  %s3 = inlined_call_operand.vmem [shape: bf16[32,96], index: 3, kind: input, shape index: {}]
  %s4 = inlined_call_operand.vmem [shape: bf16[2,16,96], index: 4, kind: output, shape index: {}]
  %s5 = sld [smem:[#allocation0]]
  $region49: #{vit_block.3} parent=0
    _
  %s7 = ssub.s32 1, %s5
  %s8 = scalar_select 0, %s7, %s5
  loop: start=0, step=1, limit=6
  $region2: #{vit_block.3} parent=0 // loop_pre_header
    _
  $region3: #{vit_block.3} parent=0 // loop_header
    %s10 = sphi 0, %s14
    %p11 = scmp.ge.s32.totalorder %s10, 6
    %s17 = sphi 0, %s29
    %s18 = sphi 0, %s25
    %s19 = sphi 0, %s17
    %s20 = sphi 0, %s18
    %s21 = sphi 0, %s19
    %s22 = sphi 0, %s20
    %s34 = sphi 0, %s36
    %s37 = sphi 0, %s34
    %s38 = sphi 0, %s37
    %s54 = sphi 0, %s38
    %s58 = sphi 0, %s58
    %s60 = sphi 0, %s58
    %s61 = sphi 0, %s60
    %s75 = sphi 0, %s61
    %s79 = sphi 0, %s79
    %s81 = sphi 0, %s79
    %s82 = sphi 0, %s81
    %s96 = sphi 0, %s82
    %s100 = sphi 0, %s100
    %s102 = sphi 0, %s100
    %s103 = sphi 0, %s102
    %s117 = sphi 0, %s103
    %s125 = sphi 0, %s127
    %s128 = sphi 0, %s125
    %s129 = sphi 0, %s128
    %s145 = sphi 0, %s129
  $region4: #{vit_block.3} parent=0 // loop_header_branch
    %13 = sbr.rel (%p11) target = $region8
  $region5: #{vit_block.3} parent=0 // loop_body
    %s15 = ssub.s32 %s10, 1
    %s16 = ssub.s32 %s10, 2
    %s23 = sadd.s32 1, %s18
    %p24 = scmp.ge.s32.totalorder %s23, 2
    %s25 = scalar_select %p24, 0, %s23
    %s26 = sadd.s32 1, %s17
    %s27 = scalar_select %p24, %s26, %s17
    %p28 = scmp.ge.s32.totalorder %s27, 2
    %s29 = scalar_select %p28, 0, %s27
    %s30 = ssub.s32 %s17, %s29
    %s31 = ssub.s32 %s18, %s25
    %s32 = sor.u32 %s30, %s31
    %p33 = scmp.eq.s32.totalorder %s32, 0
    %s35 = sadd.s32 %s34, 1
    %s36 = scalar_select %p33, %s34, %s35
    %p39 = pneg %p33
    %p40 = scmp.eq.s32.totalorder %s10, 3
    %p41 = por %p39, %p40
    %p42 = scmp.ne.s32.totalorder %s34, %s37
    %p43 = scmp.eq.s32.totalorder %s10, 0
    %p44 = por %p42, %p43
    %p45 = scmp.ne.s32.totalorder %s34, %s37
    %p46 = scmp.eq.s32.totalorder %s15, 3
    %p47 = por %p45, %p46
    %p48 = scmp.ne.s32.totalorder %s37, %s38
    %p49 = scmp.eq.s32.totalorder %s15, 0
    %p50 = por %p48, %p49
    %p51 = scmp.ne.s32.totalorder %s37, %s38
    %p52 = scmp.eq.s32.totalorder %s16, 3
    %p53 = por %p51, %p52
    %p55 = scmp.ne.s32.totalorder %s38, %s54
    %p56 = scmp.eq.s32.totalorder %s16, 0
    %p57 = por %p55, %p56
    %s59 = sadd.s32 %s58, 1
    %p62 = scmp.eq.s32.totalorder %s10, 3
    %p63 = scmp.ne.s32.totalorder %s58, %s60
    %p64 = scmp.eq.s32.totalorder %s10, 0
    %p65 = por %p63, %p64
    %p66 = scmp.ne.s32.totalorder %s58, %s60
    %p67 = scmp.eq.s32.totalorder %s15, 3
    %p68 = por %p66, %p67
    %p69 = scmp.ne.s32.totalorder %s60, %s61
    %p70 = scmp.eq.s32.totalorder %s15, 0
    %p71 = por %p69, %p70
    %p72 = scmp.ne.s32.totalorder %s60, %s61
    %p73 = scmp.eq.s32.totalorder %s16, 3
    %p74 = por %p72, %p73
    %p76 = scmp.ne.s32.totalorder %s61, %s75
    %p77 = scmp.eq.s32.totalorder %s16, 0
    %p78 = por %p76, %p77
    %s80 = sadd.s32 %s79, 1
    %p83 = scmp.eq.s32.totalorder %s10, 3
    %p84 = scmp.ne.s32.totalorder %s79, %s81
    %p85 = scmp.eq.s32.totalorder %s10, 0
    %p86 = por %p84, %p85
    %p87 = scmp.ne.s32.totalorder %s79, %s81
    %p88 = scmp.eq.s32.totalorder %s15, 3
    %p89 = por %p87, %p88
    %p90 = scmp.ne.s32.totalorder %s81, %s82
    %p91 = scmp.eq.s32.totalorder %s15, 0
    %p92 = por %p90, %p91
    %p93 = scmp.ne.s32.totalorder %s81, %s82
    %p94 = scmp.eq.s32.totalorder %s16, 3
    %p95 = por %p93, %p94
    %p97 = scmp.ne.s32.totalorder %s82, %s96
    %p98 = scmp.eq.s32.totalorder %s16, 0
    %p99 = por %p97, %p98
    %s101 = sadd.s32 %s100, 1
    %p104 = scmp.eq.s32.totalorder %s10, 3
    %p105 = scmp.ne.s32.totalorder %s100, %s102
    %p106 = scmp.eq.s32.totalorder %s10, 0
    %p107 = por %p105, %p106
    %p108 = scmp.ne.s32.totalorder %s100, %s102
    %p109 = scmp.eq.s32.totalorder %s15, 3
    %p110 = por %p108, %p109
    %p111 = scmp.ne.s32.totalorder %s102, %s103
    %p112 = scmp.eq.s32.totalorder %s15, 0
    %p113 = por %p111, %p112
    %p114 = scmp.ne.s32.totalorder %s102, %s103
    %p115 = scmp.eq.s32.totalorder %s16, 3
    %p116 = por %p114, %p115
    %p118 = scmp.ne.s32.totalorder %s103, %s117
    %p119 = scmp.eq.s32.totalorder %s16, 0
    %p120 = por %p118, %p119
    %s121 = ssub.s32 %s17, %s29
    %s122 = ssub.s32 %s18, %s25
    %s123 = sor.u32 %s121, %s122
    %p124 = scmp.eq.s32.totalorder %s123, 0
    %s126 = sadd.s32 %s125, 1
    %s127 = scalar_select %p124, %s125, %s126
    %p130 = pneg %p124
    %p131 = scmp.eq.s32.totalorder %s10, 3
    %p132 = por %p130, %p131
    %p133 = scmp.ne.s32.totalorder %s125, %s128
    %p134 = scmp.eq.s32.totalorder %s10, 0
    %p135 = por %p133, %p134
    %p136 = scmp.ne.s32.totalorder %s125, %s128
    %p137 = scmp.eq.s32.totalorder %s15, 3
    %p138 = por %p136, %p137
    %p139 = scmp.ne.s32.totalorder %s128, %s129
    %p140 = scmp.eq.s32.totalorder %s15, 0
    %p141 = por %p139, %p140
    %p142 = scmp.ne.s32.totalorder %s128, %s129
    %p143 = scmp.eq.s32.totalorder %s16, 3
    %p144 = por %p142, %p143
    %p146 = scmp.ne.s32.totalorder %s129, %s145
    %p147 = scmp.eq.s32.totalorder %s16, 0
    %p148 = por %p146, %p147
    %p149 = scmp.le.s32.totalorder 1, %s10
    %p150 = scmp.lt.s32.totalorder %s10, 5
    %p151 = pnand %p149, %p150
    %p152 = pneg %p151
    // Predicated region
    $region9: #{vit_block.3} parent=5 // pred_check
      _
    $region10: #{vit_block.3} parent=5 // pred_check_branch
      %154 = sbr.rel (%p151) target = $region12
    $region11: #{vit_block.3} parent=5 // pred_region
      %s155 = ssub.s32 %s10, 1
      // Predicated region
      $region13: #{vit_block.3} parent=11 // pred_check
        %p156 = pneg %p71
      $region14: #{vit_block.3} parent=11 // pred_check_branch
        %158 = sbr.rel (%p156) target = $region16
      $region15: #{vit_block.3} parent=11 // pred_region
        _
      $region16: #{vit_block.3} parent=11 // pred_fallthru
        _
      // Predicated region
      $region17: #{vit_block.3} parent=11 // pred_check
        %p159 = pneg %p92
      $region18: #{vit_block.3} parent=11 // pred_check_branch
        %161 = sbr.rel (%p159) target = $region20
      $region19: #{vit_block.3} parent=11 // pred_region
        _
      $region20: #{vit_block.3} parent=11 // pred_fallthru
        _
      // Predicated region
      $region21: #{vit_block.3} parent=11 // pred_check
        %p162 = pneg %p113
      $region22: #{vit_block.3} parent=11 // pred_check_branch
        %164 = sbr.rel (%p162) target = $region24
      $region23: #{vit_block.3} parent=11 // pred_region
        _
      $region24: #{vit_block.3} parent=11 // pred_fallthru
        _
    $region12: #{vit_block.3} parent=5 // pred_fallthru
      _
    %p165 = scmp.lt.s32.totalorder %s10, 4
    // Predicated region
    $region25: #{vit_block.3} parent=5 // pred_check
      %p166 = pneg %p165
    $region26: #{vit_block.3} parent=5 // pred_check_branch
      %168 = sbr.rel (%p166) target = $region28
    $region27: #{vit_block.3} parent=5 // pred_region
      // Predicated region
      $region29: #{vit_block.3} parent=27 // pred_check
        %p169 = pneg %p44
      $region30: #{vit_block.3} parent=27 // pred_check_branch
        %171 = sbr.rel (%p169) target = $region32
      $region31: #{vit_block.3} parent=27 // pred_region
        %p172 = scmp.lt.s32.totalorder %s17, 1
        %s173 = scalar_select %p172, %s17, 1
        %p174 = scmp.lt.s32.totalorder %s18, 1
        %s175 = scalar_select %p174, %s18, 1
        %s176 = smul.addr %s173, 2
        %s177 = sadd.s32 %s175, %s176
        %s178 = smul.addr %s177, 8
        %s179 = scalar_lea.vmem %s0, %s178
      $region32: #{vit_block.3} parent=27 // pred_fallthru
        _
    $region28: #{vit_block.3} parent=5 // pred_fallthru
      _
    %p180 = scmp.le.s32.totalorder 1, %s10
    %p181 = scmp.lt.s32.totalorder %s10, 5
    %p182 = pnand %p180, %p181
    %p183 = pneg %p182
    // Predicated region
    $region33: #{vit_block.3} parent=5 // pred_check
      _
    $region34: #{vit_block.3} parent=5 // pred_check_branch
      %185 = sbr.rel (%p182) target = $region36
    $region35: #{vit_block.3} parent=5 // pred_region
      %s186 = ssub.s32 %s10, 1
      %p187 = scmp.lt.s32.totalorder %s19, 1
      %s188 = scalar_select %p187, %s19, 1
      %p189 = scmp.lt.s32.totalorder %s20, 1
      %s190 = scalar_select %p189, %s20, 1
      %s191 = smul.addr %s188, 2
      %s192 = sadd.s32 %s190, %s191
      %s193 = smul.addr %s192, 8
      %s194 = scalar_lea.vmem %s0, %s193
      %p195 = pneg %p50
      %p196 = pneg %p47
      %p197 = pneg %p71
      %p198 = pneg %p68
      %p199 = pneg %p92
      %p200 = pneg %p89
      %p201 = pneg %p113
      %p202 = pneg %p110
      %p203 = pneg %p141
      %p204 = pneg %p138
      %p205 = scmp.lt.s32.totalorder %s19, 1
      %s206 = scalar_select %p205, %s19, 1
      %p207 = scmp.lt.s32.totalorder %s20, 1
      %s208 = scalar_select %p207, %s20, 1
      %s209 = smul.addr %s206, 2
      %s210 = sadd.s32 %s208, %s209
      %s211 = smul.addr %s210, 4
      %s212 = scalar_lea.vmem %s4, %s211
      %p213 = scmp.lt.s32.totalorder %s19, 1
      %s214 = scalar_select %p213, %s19, 1
      %p215 = scmp.lt.s32.totalorder %s20, 1
      %s216 = scalar_select %p215, %s20, 1
      %s217 = smul.addr %s214, 2
      %s218 = sadd.s32 %s216, %s217
      %s219 = smul.addr %s218, 8
      %s220 = scalar_lea.vmem %s0, %s219
      %p221 = scmp.lt.s32.totalorder %s19, 1
      %s222 = scalar_select %p221, %s19, 1
      %p223 = scmp.lt.s32.totalorder %s20, 1
      %s224 = scalar_select %p223, %s20, 1
      %s225 = smul.addr %s222, 2
      %s226 = sadd.s32 %s224, %s225
      %s227 = smul.addr %s226, 4
      %s228 = scalar_lea.vmem %s4, %s227
      %v230 = vld [vmem:[%s220] sm:$0xff]
      %v231 = vld [vmem:[%s1] sm:$0x1]
      %v232 = vld [vmem:[%s2] sm:$0x1]
      %vm233 = vcmask 261120
      %v234 = vsel %vm233, %v230, 0.0
      %235 = vadd.xlane.f32.xlu0 %v234
      %v236 = vpop.xlane.xlu0 %235
      %v237 = vrcp.pop 32.0
      %v238 = vmul.f32 32.0, %v237
      %v239 = vsub.f32 1.0, %v238
      %v240 = vmul.f32 %v237, %v239
      %v241 = vadd.f32 %v237, %v240
      %vm242 = vweird.f32 %v237
      %v243 = vsel %vm242, %v237, %v241
      %v244 = vmul.f32 %v236, %v243
      %v245 = vsub.f32 %v230, %v244
      %v246 = vmul.f32 %v245, %v245
      %v247 = vsel %vm233, %v246, 0.0
      %248 = vadd.xlane.f32.xlu0 %v247
      %v249 = vpop.xlane.xlu0 %248
      %v250 = vmul.f32 %v249, %v243
      %v251 = vadd.f32 %v250, 1e-05
      %v252 = vrsqrt.pop %v251
      %v253 = vmul.f32 %v252, %v251
      %v254 = vmul.f32 %v253, %v252
      %v255 = vmul.f32 0.5, %v254
      %v256 = vsub.f32 1.5, %v255
      %v257 = vmul.f32 %v252, %v256
      %vm258 = vweird.f32 %v251
      %vm259 = vweird.f32 %v252
      %vm260 = vmor %vm258, %vm259
      %v261 = vsel %vm260, %v252, %v257
      %v262 = vmul.f32 %v245, %v261
      %v264 = vperm.slane %v231, 0
      %v266 = vmul.f32 %v262, %v264
      %v268 = vperm.slane %v232, 0
      %v270 = vadd.f32 %v266, %v268
      %v271 = vpack.c.bf16 %v270, %v270
      %v272 = vld [vmem:[%s3] sm:$0xf]
      %v273 = vld [vmem:[%s3 + $0x4] sm:$0xf]
      %v274 = vld [vmem:[%s3 + $0x8] sm:$0xf]
      %v275 = vld [vmem:[%s3 + $0xc] sm:$0xf]
      %v280 = vunpack.c.l.b16 %v272
      %v281 = vunpack.c.l.b16 %v273
      %v282 = vunpack.c.l.b16 %v274
      %v283 = vunpack.c.l.b16 %v275
      %v284 = vpack.c.b16 %v281, %v280
      %v285 = vpack.c.b16 %v283, %v282
      %v289 = vsel %vm233, %v271, 0
      %291 = vmatpush.bf16.msra.mxu0 0
      %292 = vmatpush.bf16.msra.mxu0 0
      %293 = vmatpush.bf16.msra.mxu0 0
      %294 = vmatpush.bf16.msra.mxu0 0
      %295 = vmatpush.bf16.msra.mxu0 0
      %296 = vmatpush.bf16.msra.mxu0 0
      %297 = vmatpush.bf16.msra.mxu0 %v285
      %298 = vmatpush.bf16.msra.mxu0 %v284
      %299 = vmatmul.bf16.gmra.mxu0 %v289
      %v300 = vpop.f32.mrf.mxu0
      %v301 = vadd.f32 0.0, %v300
      %v302 = vpop.f32.mrf.mxu0
      %303 = vdwg.mxu0
      %v304 = vpack.c.bf16 %v301, %v301
      %vm305 = vcmask 781312
      %306 = vst.msk [vmem:[%s228] sm:$0xf] %vm305, %v304
      %p307 = scmp.lt.s32.totalorder %s19, 1
      %s308 = scalar_select %p307, %s19, 1
      %p309 = scmp.lt.s32.totalorder %s20, 1
      %s310 = scalar_select %p309, %s20, 1
      %s311 = smul.addr %s308, 2
      %s312 = sadd.s32 %s310, %s311
      %s313 = smul.addr %s312, 4
      %s314 = scalar_lea.vmem %s4, %s313
      // Predicated region
      $region37: #{vit_block.3} parent=35 // pred_check
        %p315 = pneg %p138
      $region38: #{vit_block.3} parent=35 // pred_check_branch
        %317 = sbr.rel (%p315) target = $region40
      $region39: #{vit_block.3} parent=35 // pred_region
        _
      $region40: #{vit_block.3} parent=35 // pred_fallthru
        _
    $region36: #{vit_block.3} parent=5 // pred_fallthru
      _
    %p318 = scmp.le.s32.totalorder 2, %s10
    // Predicated region
    $region41: #{vit_block.3} parent=5 // pred_check
      %p319 = pneg %p318
    $region42: #{vit_block.3} parent=5 // pred_check_branch
      %321 = sbr.rel (%p319) target = $region44
    $region43: #{vit_block.3} parent=5 // pred_region
      %s322 = ssub.s32 %s10, 2
      // Predicated region
      $region45: #{vit_block.3} parent=43 // pred_check
        %p323 = pneg %p144
      $region46: #{vit_block.3} parent=43 // pred_check_branch
        %325 = sbr.rel (%p323) target = $region48
      $region47: #{vit_block.3} parent=43 // pred_region
        %p326 = scmp.lt.s32.totalorder %s21, 1
        %s327 = scalar_select %p326, %s21, 1
        %p328 = scmp.lt.s32.totalorder %s22, 1
        %s329 = scalar_select %p328, %s22, 1
        %s330 = smul.addr %s327, 2
        %s331 = sadd.s32 %s329, %s330
        %s332 = smul.addr %s331, 4
        %s333 = scalar_lea.vmem %s4, %s332
      $region48: #{vit_block.3} parent=43 // pred_fallthru
        _
    $region44: #{vit_block.3} parent=5 // pred_fallthru
      _
  $region6: #{vit_block.3} parent=0 // loop_footer
    %s14 = sadd.s32 1, %s10
  $region7: #{vit_block.3} parent=0 // loop_footer_branch
    %9 = sbr.rel target = $region3
  $region8: #{vit_block.3} parent=0 // loop_exit
    _

// kernel: vit_block.4
$region0: #{vit_block.4}
  #allocation0 [shape = 'u32[]', space=smem, size = 0x4, offset = 0x4, fixed_abs, tag = 'smem constant byte address 0x4 - core index']
  #allocation1 [shape = 'u32[72,128]{1,0:T(1,128)}', space=vmem, size = 0x9000, scoped, tag = 'internal scratch']
  %s0 = inlined_call_operand.vmem [shape: bf16[2,4,16,8], index: 0, kind: input, shape index: {}]
  %s1 = inlined_call_operand.vmem [shape: bf16[2,4,8,16], index: 1, kind: input, shape index: {}]
  %s2 = inlined_call_operand.vmem [shape: bf16[2,4,16,8], index: 2, kind: input, shape index: {}]
  %s3 = inlined_call_operand.vmem [shape: bf16[2,4,16,8], index: 3, kind: output, shape index: {}]
  %s4 = sld [smem:[#allocation0]]
  $region123: #{vit_block.4} parent=0
    _
  %s6 = ssub.s32 1, %s4
  %s7 = scalar_select 0, %s6, %s4
  $region1: #{vit_block.4} parent=0
    #allocation2 [shape = 'u8[16384]{0}', space=vmem, size = 0x4000, scoped, tag = 'input window, operand 0']
    #allocation3 [shape = 'u8[16384]{0}', space=vmem, size = 0x4000, scoped, tag = 'output window, operand 0']
    loop: start=0, step=1, limit=6
    $region2: #{vit_block.4} parent=1 // loop_pre_header
      _
    $region3: #{vit_block.4} parent=1 // loop_header
      %s9 = sphi 0, %s13
      %p10 = scmp.ge.s32.totalorder %s9, 6
      %s16 = sphi 0, %s28
      %s17 = sphi 0, %s24
      %s18 = sphi 0, %s16
      %s19 = sphi 0, %s17
      %s20 = sphi 0, %s18
      %s21 = sphi 0, %s19
      %s33 = sphi 0, %s35
      %s36 = sphi 0, %s33
      %s37 = sphi 0, %s36
      %s53 = sphi 0, %s37
      %s59 = sphi 0, %s61
      %s62 = sphi 0, %s59
      %s63 = sphi 0, %s62
      %s79 = sphi 0, %s63
      %s85 = sphi 0, %s87
      %s88 = sphi 0, %s85
      %s89 = sphi 0, %s88
      %s105 = sphi 0, %s89
      %s113 = sphi 0, %s115
      %s116 = sphi 0, %s113
      %s117 = sphi 0, %s116
      %s133 = sphi 0, %s117
    $region4: #{vit_block.4} parent=1 // loop_header_branch
      %12 = sbr.rel (%p10) target = $region8
    $region5: #{vit_block.4} parent=1 // loop_body
      %s14 = ssub.s32 %s9, 1
      %s15 = ssub.s32 %s9, 2
      %s22 = sadd.s32 1, %s17
      %p23 = scmp.ge.s32.totalorder %s22, 2
      %s24 = scalar_select %p23, 0, %s22
      %s25 = sadd.s32 1, %s16
      %s26 = scalar_select %p23, %s25, %s16
      %p27 = scmp.ge.s32.totalorder %s26, 2
      %s28 = scalar_select %p27, 0, %s26
      %s29 = ssub.s32 %s16, %s28
      %s30 = ssub.s32 %s17, %s24
      %s31 = sor.u32 %s29, %s30
      %p32 = scmp.eq.s32.totalorder %s31, 0
      %s34 = sadd.s32 %s33, 1
      %s35 = scalar_select %p32, %s33, %s34
      %p38 = pneg %p32
      %p39 = scmp.eq.s32.totalorder %s9, 3
      %p40 = por %p38, %p39
      %p41 = scmp.ne.s32.totalorder %s33, %s36
      %p42 = scmp.eq.s32.totalorder %s9, 0
      %p43 = por %p41, %p42
      %p44 = scmp.ne.s32.totalorder %s33, %s36
      %p45 = scmp.eq.s32.totalorder %s14, 3
      %p46 = por %p44, %p45
      %p47 = scmp.ne.s32.totalorder %s36, %s37
      %p48 = scmp.eq.s32.totalorder %s14, 0
      %p49 = por %p47, %p48
      %p50 = scmp.ne.s32.totalorder %s36, %s37
      %p51 = scmp.eq.s32.totalorder %s15, 3
      %p52 = por %p50, %p51
      %p54 = scmp.ne.s32.totalorder %s37, %s53
      %p55 = scmp.eq.s32.totalorder %s15, 0
      %p56 = por %p54, %p55
      %s57 = ssub.s32 %s16, %s28
      %p58 = scmp.eq.s32.totalorder %s57, 0
      %s60 = sadd.s32 %s59, 1
      %s61 = scalar_select %p58, %s59, %s60
      %p64 = pneg %p58
      %p65 = scmp.eq.s32.totalorder %s9, 3
      %p66 = por %p64, %p65
      %p67 = scmp.ne.s32.totalorder %s59, %s62
      %p68 = scmp.eq.s32.totalorder %s9, 0
      %p69 = por %p67, %p68
      %p70 = scmp.ne.s32.totalorder %s59, %s62
      %p71 = scmp.eq.s32.totalorder %s14, 3
      %p72 = por %p70, %p71
      %p73 = scmp.ne.s32.totalorder %s62, %s63
      %p74 = scmp.eq.s32.totalorder %s14, 0
      %p75 = por %p73, %p74
      %p76 = scmp.ne.s32.totalorder %s62, %s63
      %p77 = scmp.eq.s32.totalorder %s15, 3
      %p78 = por %p76, %p77
      %p80 = scmp.ne.s32.totalorder %s63, %s79
      %p81 = scmp.eq.s32.totalorder %s15, 0
      %p82 = por %p80, %p81
      %s83 = ssub.s32 %s16, %s28
      %p84 = scmp.eq.s32.totalorder %s83, 0
      %s86 = sadd.s32 %s85, 1
      %s87 = scalar_select %p84, %s85, %s86
      %p90 = pneg %p84
      %p91 = scmp.eq.s32.totalorder %s9, 3
      %p92 = por %p90, %p91
      %p93 = scmp.ne.s32.totalorder %s85, %s88
      %p94 = scmp.eq.s32.totalorder %s9, 0
      %p95 = por %p93, %p94
      %p96 = scmp.ne.s32.totalorder %s85, %s88
      %p97 = scmp.eq.s32.totalorder %s14, 3
      %p98 = por %p96, %p97
      %p99 = scmp.ne.s32.totalorder %s88, %s89
      %p100 = scmp.eq.s32.totalorder %s14, 0
      %p101 = por %p99, %p100
      %p102 = scmp.ne.s32.totalorder %s88, %s89
      %p103 = scmp.eq.s32.totalorder %s15, 3
      %p104 = por %p102, %p103
      %p106 = scmp.ne.s32.totalorder %s89, %s105
      %p107 = scmp.eq.s32.totalorder %s15, 0
      %p108 = por %p106, %p107
      %s109 = ssub.s32 %s16, %s28
      %s110 = ssub.s32 %s17, %s24
      %s111 = sor.u32 %s109, %s110
      %p112 = scmp.eq.s32.totalorder %s111, 0
      %s114 = sadd.s32 %s113, 1
      %s115 = scalar_select %p112, %s113, %s114
      %p118 = pneg %p112
      %p119 = scmp.eq.s32.totalorder %s9, 3
      %p120 = por %p118, %p119
      %p121 = scmp.ne.s32.totalorder %s113, %s116
      %p122 = scmp.eq.s32.totalorder %s9, 0
      %p123 = por %p121, %p122
      %p124 = scmp.ne.s32.totalorder %s113, %s116
      %p125 = scmp.eq.s32.totalorder %s14, 3
      %p126 = por %p124, %p125
      %p127 = scmp.ne.s32.totalorder %s116, %s117
      %p128 = scmp.eq.s32.totalorder %s14, 0
      %p129 = por %p127, %p128
      %p130 = scmp.ne.s32.totalorder %s116, %s117
      %p131 = scmp.eq.s32.totalorder %s15, 3
      %p132 = por %p130, %p131
      %p134 = scmp.ne.s32.totalorder %s117, %s133
      %p135 = scmp.eq.s32.totalorder %s15, 0
      %p136 = por %p134, %p135
      %p137 = scmp.le.s32.totalorder 1, %s9
      %p138 = scmp.lt.s32.totalorder %s9, 5
      %p139 = pnand %p137, %p138
      %p140 = pneg %p139
      // Predicated region
      $region9: #{vit_block.4} parent=5 // pred_check
        _
      $region10: #{vit_block.4} parent=5 // pred_check_branch
        %142 = sbr.rel (%p139) target = $region12
      $region11: #{vit_block.4} parent=5 // pred_region
        %s143 = ssub.s32 %s9, 1
      $region12: #{vit_block.4} parent=5 // pred_fallthru
        _
      %p144 = scmp.lt.s32.totalorder %s9, 4
      // Predicated region
      $region13: #{vit_block.4} parent=5 // pred_check
        %p145 = pneg %p144
      $region14: #{vit_block.4} parent=5 // pred_check_branch
        %147 = sbr.rel (%p145) target = $region16
      $region15: #{vit_block.4} parent=5 // pred_region
        // Predicated region
        $region17: #{vit_block.4} parent=15 // pred_check
          %p148 = pneg %p43
        $region18: #{vit_block.4} parent=15 // pred_check_branch
          %150 = sbr.rel (%p148) target = $region20
        $region19: #{vit_block.4} parent=15 // pred_region
          %s151 = sand.u32 %s33, 1
          %s152 = sand.u32 %s33, 1
          %s153 = smul.addr %s152, 16
          %s154 = scalar_lea.vmem [#allocation2], %s153
          %s155 = smul.addr %s16, 8
          %s156 = sadd.s32 %s17, %s155
          %s157 = smul.addr %s156, 4
          %s158 = scalar_lea.vmem %s0, %s157
          // Predicated region
          $region21: #{vit_block.4} parent=19 // pred_check
            _
          $region22: #{vit_block.4} parent=19 // pred_check_branch
            %160 = sbr.rel (0) target = $region24
          $region23: #{vit_block.4} parent=19 // pred_region
            // Predicated region
            $region25: #{vit_block.4} parent=23 // pred_check
              _
            $region26: #{vit_block.4} parent=23 // pred_check_branch
              %162 = sbr.rel target = $region28
            $region27: #{vit_block.4} parent=23 // pred_region
              // Predicated region
              $region40: #{vit_block.4} parent=27 // pred_check
                _
              $region41: #{vit_block.4} parent=27 // pred_check_branch
                %184 = sbr.rel (0) target = $region43
              $region42: #{vit_block.4} parent=27 // pred_region
                loop: start=0, step=1, limit=1
                $region44: #{vit_block.4} parent=42 // loop_pre_header
                  _
                $region45: #{vit_block.4} parent=42 // loop_header
                  %s186 = sphi 0, %s190
                  %p187 = scmp.ge.s32.totalorder %s186, 1
                  %s191 = sphi %s158, %s158
                  %s192 = sphi %s154, %s154
                $region46: #{vit_block.4} parent=42 // loop_header_branch
                  %189 = sbr.rel (%p187) target = $region50
                $region47: #{vit_block.4} parent=42 // loop_body
                  _
                $region48: #{vit_block.4} parent=42 // loop_footer
                  %s190 = sadd.s32 1, %s186
                $region49: #{vit_block.4} parent=42 // loop_footer_branch
                  %185 = sbr.rel target = $region45
                $region50: #{vit_block.4} parent=42 // loop_exit
                  _
                %s194 = ssub.s32 16, 1
                loop: start=0, step=1, limit=1
                $region51: #{vit_block.4} parent=42 // loop_pre_header
                  _
                $region52: #{vit_block.4} parent=42 // loop_header
                  %s196 = sphi 0, %s200
                  %p197 = scmp.ge.s32.totalorder %s196, 1
                  %s201 = sphi %s158, %s158
                  %s202 = sphi %s154, %s154
                $region53: #{vit_block.4} parent=42 // loop_header_branch
                  %199 = sbr.rel (%p197) target = $region57
                $region54: #{vit_block.4} parent=42 // loop_body
                  %v203 = vld [vmem:[%s201] sm:%s194]
                  %204 = vst [vmem:[%s202] sm:%s194] %v203
                  %v205 = vld [vmem:[%s201 + $0x8] sm:%s194]
                  %206 = vst [vmem:[%s202 + $0x4] sm:%s194] %v205
                  %v207 = vld [vmem:[%s201 + $0x10] sm:%s194]
                  %208 = vst [vmem:[%s202 + $0x8] sm:%s194] %v207
                  %v209 = vld [vmem:[%s201 + $0x18] sm:%s194]
                  %210 = vst [vmem:[%s202 + $0xc] sm:%s194] %v209
                $region55: #{vit_block.4} parent=42 // loop_footer
                  %s200 = sadd.s32 1, %s196
                $region56: #{vit_block.4} parent=42 // loop_footer_branch
                  %195 = sbr.rel target = $region52
                $region57: #{vit_block.4} parent=42 // loop_exit
                  _
              $region43: #{vit_block.4} parent=27 // pred_fallthru
                _
            $region28: #{vit_block.4} parent=23 // pred_fallthru
              _
            // Predicated region
            $region29: #{vit_block.4} parent=23 // pred_check
              _
            $region30: #{vit_block.4} parent=23 // pred_check_branch
              %164 = sbr.rel (0) target = $region32
            $region31: #{vit_block.4} parent=23 // pred_region
              %s166 = ssub.s32 16, 1
              loop: start=0, step=1, limit=1
              $region33: #{vit_block.4} parent=31 // loop_pre_header
                _
              $region34: #{vit_block.4} parent=31 // loop_header
                %s168 = sphi 0, %s172
                %p169 = scmp.ge.s32.totalorder %s168, 1
                %s173 = sphi %s158, %s158
                %s174 = sphi %s154, %s154
              $region35: #{vit_block.4} parent=31 // loop_header_branch
                %171 = sbr.rel (%p169) target = $region39
              $region36: #{vit_block.4} parent=31 // loop_body
                %v175 = vld [vmem:[%s173] sm:%s166]
                %176 = vst [vmem:[%s174] sm:%s166] %v175
                %v177 = vld [vmem:[%s173 + $0x8] sm:%s166]
                %178 = vst [vmem:[%s174 + $0x4] sm:%s166] %v177
                %v179 = vld [vmem:[%s173 + $0x10] sm:%s166]
                %180 = vst [vmem:[%s174 + $0x8] sm:%s166] %v179
                %v181 = vld [vmem:[%s173 + $0x18] sm:%s166]
                %182 = vst [vmem:[%s174 + $0xc] sm:%s166] %v181
              $region37: #{vit_block.4} parent=31 // loop_footer
                %s172 = sadd.s32 1, %s168
              $region38: #{vit_block.4} parent=31 // loop_footer_branch
                %167 = sbr.rel target = $region34
              $region39: #{vit_block.4} parent=31 // loop_exit
                _
            $region32: #{vit_block.4} parent=23 // pred_fallthru
              _
          $region24: #{vit_block.4} parent=19 // pred_fallthru
            _
          %211 = vnop
        $region20: #{vit_block.4} parent=15 // pred_fallthru
          _
        // Predicated region
        $region58: #{vit_block.4} parent=15 // pred_check
          %p212 = pneg %p69
        $region59: #{vit_block.4} parent=15 // pred_check_branch
          %214 = sbr.rel (%p212) target = $region61
        $region60: #{vit_block.4} parent=15 // pred_region
          %p215 = scmp.lt.s32.totalorder %s16, 1
          %s216 = scalar_select %p215, %s16, 1
          %s217 = smul.addr %s216, 4
          %s218 = smul.addr %s217, 4
          %s219 = scalar_lea.vmem %s1, %s218
        $region61: #{vit_block.4} parent=15 // pred_fallthru
          _
        // Predicated region
        $region62: #{vit_block.4} parent=15 // pred_check
          %p220 = pneg %p95
        $region63: #{vit_block.4} parent=15 // pred_check_branch
          %222 = sbr.rel (%p220) target = $region65
        $region64: #{vit_block.4} parent=15 // pred_region
          %p223 = scmp.lt.s32.totalorder %s16, 1
          %s224 = scalar_select %p223, %s16, 1
          %s225 = smul.addr %s224, 8
          %s226 = smul.addr %s225, 4
          %s227 = scalar_lea.vmem %s2, %s226
        $region65: #{vit_block.4} parent=15 // pred_fallthru
          _
      $region16: #{vit_block.4} parent=5 // pred_fallthru
        _
      %p228 = scmp.le.s32.totalorder 1, %s9
      %p229 = scmp.lt.s32.totalorder %s9, 5
      %p230 = pnand %p228, %p229
      %p231 = pneg %p230
      // Predicated region
      $region66: #{vit_block.4} parent=5 // pred_check
        _
      $region67: #{vit_block.4} parent=5 // pred_check_branch
        %233 = sbr.rel (%p230) target = $region69
      $region68: #{vit_block.4} parent=5 // pred_region
        %s234 = ssub.s32 %s9, 1
        %s235 = sand.u32 %s36, 1
        %s236 = sand.u32 %s36, 1
        %s237 = smul.addr %s236, 16
        %s238 = scalar_lea.vmem [#allocation2], %s237
        // Predicated region
        $region70: #{vit_block.4} parent=68 // pred_check
          %p239 = pneg %p49
        $region71: #{vit_block.4} parent=68 // pred_check_branch
          %241 = sbr.rel (%p239) target = $region73
        $region72: #{vit_block.4} parent=68 // pred_region
          _
        $region73: #{vit_block.4} parent=68 // pred_fallthru
          _
        %s242 = sand.u32 %s36, 1
        %s243 = sand.u32 %s36, 1
        %s244 = smul.addr %s243, 16
        %s245 = scalar_lea.vmem [#allocation2], %s244
        %p246 = pneg %p49
        %p247 = pneg %p46
        %p248 = scmp.lt.s32.totalorder %s18, 1
        %s249 = scalar_select %p248, %s18, 1
        %s250 = smul.addr %s249, 4
        %s251 = smul.addr %s250, 4
        %s252 = scalar_lea.vmem %s1, %s251
        %p253 = pneg %p75
        %p254 = pneg %p72
        %p255 = scmp.lt.s32.totalorder %s18, 1
        %s256 = scalar_select %p255, %s18, 1
        %s257 = smul.addr %s256, 8
        %s258 = smul.addr %s257, 4
        %s259 = scalar_lea.vmem %s2, %s258
        %p260 = pneg %p101
        %p261 = pneg %p98
        %p262 = pneg %p129
        %p263 = pneg %p126
        %s264 = sand.u32 %s116, 1
        %s265 = sand.u32 %s116, 1
        %s266 = smul.addr %s265, 16
        %s267 = scalar_lea.vmem [#allocation3], %s266
        %p268 = scmp.lt.s32.totalorder %s18, 1
        %s269 = scalar_select %p268, %s18, 1
        %s270 = smul.addr %s269, 4
        %s271 = smul.addr %s270, 4
        %s272 = scalar_lea.vmem %s1, %s271
        %p273 = scmp.lt.s32.totalorder %s18, 1
        %s274 = scalar_select %p273, %s18, 1
        %s275 = smul.addr %s274, 8
        %s276 = smul.addr %s275, 4
        %s277 = scalar_lea.vmem %s2, %s276
        %v279 = vld [vmem:[%s238] sm:$0xf]
        %v280 = vld [vmem:[%s238 + $0x4] sm:$0xf]
        %v281 = vld [vmem:[%s238 + $0x8] sm:$0xf]
        %v282 = vld [vmem:[%s238 + $0xc] sm:$0xf]
        %v283 = vld [vmem:[%s272] sm:$0xf]
        %v284 = vld [vmem:[%s272 + $0x4] sm:$0xf]
        %v285 = vld [vmem:[%s272 + $0x8] sm:$0xf]
        %v286 = vld [vmem:[%s272 + $0xc] sm:$0xf]
        %v287 = vld [vmem:[%s277] sm:$0xf]
        %v288 = vld [vmem:[%s277 + $0x4] sm:$0xf]
        %v289 = vld [vmem:[%s277 + $0x8] sm:$0xf]
        %v290 = vld [vmem:[%s277 + $0xc] sm:$0xf]
        %v291 = vld [vmem:[%s277 + $0x10] sm:$0xf]
        %v292 = vld [vmem:[%s277 + $0x14] sm:$0xf]
        %v293 = vld [vmem:[%s277 + $0x18] sm:$0xf]
        %v294 = vld [vmem:[%s277 + $0x1c] sm:$0xf]
        %vm295 = vcmask 64512
        %v297 = vsel %vm295, %v279, 0
        %vm299 = vcmask 1043456
        %v301 = vsel %vm299, %v283, 0
        %303 = vmatpush.bf16.msra.mxu0 0
        %304 = vmatpush.bf16.msra.mxu0 0
        %305 = vmatpush.bf16.msra.mxu0 0
        %306 = vmatpush.bf16.msra.mxu0 0
        %307 = vmatpush.bf16.msra.mxu0 0
        %308 = vmatpush.bf16.msra.mxu0 0
        %309 = vmatpush.bf16.msra.mxu0 0
        %310 = vmatpush.bf16.msra.mxu0 %v301
        %311 = vmatmul.bf16.gmra.mxu0 %v297
        %v312 = vpop.f32.mrf.mxu0
        %v313 = vadd.f32 0.0, %v312
        %v314 = vpop.f32.mrf.mxu0
        %315 = vdwg.mxu0
        %v317 = vsel %vm295, %v280, 0
        %v320 = vsel %vm299, %v284, 0
        %322 = vmatpush.bf16.msra.mxu0 0
        %323 = vmatpush.bf16.msra.mxu0 0
        %324 = vmatpush.bf16.msra.mxu0 0
        %325 = vmatpush.bf16.msra.mxu0 0
        %326 = vmatpush.bf16.msra.mxu0 0
        %327 = vmatpush.bf16.msra.mxu0 0
        %328 = vmatpush.bf16.msra.mxu0 0
        %329 = vmatpush.bf16.msra.mxu0 %v320
        %330 = vmatmul.bf16.gmra.mxu0 %v317
        %v331 = vpop.f32.mrf.mxu0
        %v332 = vadd.f32 0.0, %v331
        %v333 = vpop.f32.mrf.mxu0
        %334 = vdwg.mxu0
        %v336 = vsel %vm295, %v281, 0
        %v339 = vsel %vm299, %v285, 0
        %341 = vmatpush.bf16.msra.mxu0 0
        %342 = vmatpush.bf16.msra.mxu0 0
        %343 = vmatpush.bf16.msra.mxu0 0
        %344 = vmatpush.bf16.msra.mxu0 0
        %345 = vmatpush.bf16.msra.mxu0 0
        %346 = vmatpush.bf16.msra.mxu0 0
        %347 = vmatpush.bf16.msra.mxu0 0
        %348 = vmatpush.bf16.msra.mxu0 %v339
        %349 = vmatmul.bf16.gmra.mxu0 %v336
        %v350 = vpop.f32.mrf.mxu0
        %v351 = vadd.f32 0.0, %v350
        %v352 = vpop.f32.mrf.mxu0
        %353 = vdwg.mxu0
        %v355 = vsel %vm295, %v282, 0
        %v358 = vsel %vm299, %v286, 0
        %360 = vmatpush.bf16.msra.mxu0 0
        %361 = vmatpush.bf16.msra.mxu0 0
        %362 = vmatpush.bf16.msra.mxu0 0
        %363 = vmatpush.bf16.msra.mxu0 0
        %364 = vmatpush.bf16.msra.mxu0 0
        %365 = vmatpush.bf16.msra.mxu0 0
        %366 = vmatpush.bf16.msra.mxu0 0
        %367 = vmatpush.bf16.msra.mxu0 %v358
        %368 = vmatmul.bf16.gmra.mxu0 %v355
        %v369 = vpop.f32.mrf.mxu0
        %v370 = vadd.f32 0.0, %v369
        %v371 = vpop.f32.mrf.mxu0
        %372 = vdwg.mxu0
        %v373 = vlaneseq
        %v374 = vand.u32 %v373, 127
        %vm375 = vcmp.lt.s32.totalorder %v374, 12
        %v376 = vsel %vm375, %v313, -1e+30
        %v377 = vsel %vm375, %v332, -1e+30
        %v378 = vsel %vm375, %v351, -1e+30
        %v379 = vsel %vm375, %v370, -1e+30
        %vm380 = vcmask 130048
        %v381 = vsel %vm380, %v376, -inf
        %382 = vmax.xlane.f32.xlu0 %v381
        %v383 = vpop.xlane.xlu0 %382
        %v384 = vsel %vm380, %v377, -inf
        %385 = vmax.xlane.f32.xlu0 %v384
        %v386 = vpop.xlane.xlu0 %385
        %v387 = vsel %vm380, %v378, -inf
        %388 = vmax.xlane.f32.xlu0 %v387
        %v389 = vpop.xlane.xlu0 %388
        %v390 = vsel %vm380, %v379, -inf
        %391 = vmax.xlane.f32.xlu0 %v390
        %v392 = vpop.xlane.xlu0 %391
        %v393 = vsub.f32 %v376, %v383
        %v394 = vsub.f32 %v377, %v386
        %v395 = vsub.f32 %v378, %v389
        %v396 = vsub.f32 %v379, %v392
        %v397 = vmul.f32 %v393, 1.442695
        %v398 = vpow.pop %v397
        %v399 = vmul.f32 %v394, 1.442695
        %v400 = vpow.pop %v399
        %v401 = vmul.f32 %v395, 1.442695
        %v402 = vpow.pop %v401
        %v403 = vmul.f32 %v396, 1.442695
        %v404 = vpow.pop %v403
        %v405 = vsel %vm380, %v398, 0.0
        %406 = vadd.xlane.f32.xlu0 %v405
        %v407 = vpop.xlane.xlu0 %406
        %v408 = vsel %vm380, %v400, 0.0
        %409 = vadd.xlane.f32.xlu0 %v408
        %v410 = vpop.xlane.xlu0 %409
        %v411 = vsel %vm380, %v402, 0.0
        %412 = vadd.xlane.f32.xlu0 %v411
        %v413 = vpop.xlane.xlu0 %412
        %v414 = vsel %vm380, %v404, 0.0
        %415 = vadd.xlane.f32.xlu0 %v414
        %v416 = vpop.xlane.xlu0 %415
        %v417 = vpack.c.bf16 %v398, %v398
        %v418 = vpack.c.bf16 %v400, %v400
        %v419 = vpack.c.bf16 %v402, %v402
        %v420 = vpack.c.bf16 %v404, %v404
        %v423 = vunpack.c.l.b16 %v287
        %v424 = vunpack.c.l.b16 %v288
        %v425 = vpack.c.b16 %v424, %v423
        %v428 = vsel %vm380, %v417, 0
        %430 = vmatpush.bf16.msra.mxu0 0
        %431 = vmatpush.bf16.msra.mxu0 0
        %432 = vmatpush.bf16.msra.mxu0 0
        %433 = vmatpush.bf16.msra.mxu0 0
        %434 = vmatpush.bf16.msra.mxu0 0
        %435 = vmatpush.bf16.msra.mxu0 0
        %436 = vmatpush.bf16.msra.mxu0 0
        %437 = vmatpush.bf16.msra.mxu0 %v425
        %438 = vmatmul.bf16.gmra.mxu0 %v428
        %v439 = vpop.f32.mrf.mxu0
        %v440 = vadd.f32 0.0, %v439
        %v441 = vpop.f32.mrf.mxu0
        %442 = vdwg.mxu0
        %v445 = vunpack.c.l.b16 %v289
        %v446 = vunpack.c.l.b16 %v290
        %v447 = vpack.c.b16 %v446, %v445
        %v450 = vsel %vm380, %v418, 0
        %452 = vmatpush.bf16.msra.mxu0 0
        %453 = vmatpush.bf16.msra.mxu0 0
        %454 = vmatpush.bf16.msra.mxu0 0
        %455 = vmatpush.bf16.msra.mxu0 0
        %456 = vmatpush.bf16.msra.mxu0 0
        %457 = vmatpush.bf16.msra.mxu0 0
        %458 = vmatpush.bf16.msra.mxu0 0
        %459 = vmatpush.bf16.msra.mxu0 %v447
        %460 = vmatmul.bf16.gmra.mxu0 %v450
        %v461 = vpop.f32.mrf.mxu0
        %v462 = vadd.f32 0.0, %v461
        %v463 = vpop.f32.mrf.mxu0
        %464 = vdwg.mxu0
        %v467 = vunpack.c.l.b16 %v291
        %v468 = vunpack.c.l.b16 %v292
        %v469 = vpack.c.b16 %v468, %v467
        %v472 = vsel %vm380, %v419, 0
        %474 = vmatpush.bf16.msra.mxu0 0
        %475 = vmatpush.bf16.msra.mxu0 0
        %476 = vmatpush.bf16.msra.mxu0 0
        %477 = vmatpush.bf16.msra.mxu0 0
        %478 = vmatpush.bf16.msra.mxu0 0
        %479 = vmatpush.bf16.msra.mxu0 0
        %480 = vmatpush.bf16.msra.mxu0 0
        %481 = vmatpush.bf16.msra.mxu0 %v469
        %482 = vmatmul.bf16.gmra.mxu0 %v472
        %v483 = vpop.f32.mrf.mxu0
        %v484 = vadd.f32 0.0, %v483
        %v485 = vpop.f32.mrf.mxu0
        %486 = vdwg.mxu0
        %v489 = vunpack.c.l.b16 %v293
        %v490 = vunpack.c.l.b16 %v294
        %v491 = vpack.c.b16 %v490, %v489
        %v494 = vsel %vm380, %v420, 0
        %496 = vmatpush.bf16.msra.mxu0 0
        %497 = vmatpush.bf16.msra.mxu0 0
        %498 = vmatpush.bf16.msra.mxu0 0
        %499 = vmatpush.bf16.msra.mxu0 0
        %500 = vmatpush.bf16.msra.mxu0 0
        %501 = vmatpush.bf16.msra.mxu0 0
        %502 = vmatpush.bf16.msra.mxu0 0
        %503 = vmatpush.bf16.msra.mxu0 %v491
        %504 = vmatmul.bf16.gmra.mxu0 %v494
        %v505 = vpop.f32.mrf.mxu0
        %v506 = vadd.f32 0.0, %v505
        %v507 = vpop.f32.mrf.mxu0
        %508 = vdwg.mxu0
        %v509 = vrcp.pop %v407
        %v510 = vrcp.pop %v410
        %v511 = vrcp.pop %v413
        %v512 = vrcp.pop %v416
        %v513 = vmul.f32 %v440, %v509
        %v514 = vmul.f32 %v462, %v510
        %v515 = vmul.f32 %v484, %v511
        %v516 = vmul.f32 %v506, %v512
        %v517 = vpack.c.bf16 %v513, %v513
        %v518 = vpack.c.bf16 %v514, %v514
        %v519 = vpack.c.bf16 %v515, %v515
        %v520 = vpack.c.bf16 %v516, %v516
        %vm521 = vcmask 60416
        %522 = vst.msk [vmem:[%s267] sm:$0xf] %vm521, %v517
        %523 = vst.msk [vmem:[%s267 + $0x4] sm:$0xf] %vm521, %v518
        %524 = vst.msk [vmem:[%s267 + $0x8] sm:$0xf] %vm521, %v519
        %525 = vst.msk [vmem:[%s267 + $0xc] sm:$0xf] %vm521, %v520
        %s526 = sand.u32 %s116, 1
        %s527 = sand.u32 %s116, 1
        %s528 = smul.addr %s527, 16
        %s529 = scalar_lea.vmem [#allocation3], %s528
        // Predicated region
        $region74: #{vit_block.4} parent=68 // pred_check
          %p530 = pneg %p126
        $region75: #{vit_block.4} parent=68 // pred_check_branch
          %532 = sbr.rel (%p530) target = $region77
        $region76: #{vit_block.4} parent=68 // pred_region
          %s533 = smul.addr %s18, 8
          %s534 = sadd.s32 %s19, %s533
          %s535 = smul.addr %s534, 4
          %s536 = scalar_lea.vmem %s3, %s535
          // Predicated region
          $region78: #{vit_block.4} parent=76 // pred_check
            _
          $region79: #{vit_block.4} parent=76 // pred_check_branch
            %538 = sbr.rel (0) target = $region81
          $region80: #{vit_block.4} parent=76 // pred_region
            // Predicated region
            $region82: #{vit_block.4} parent=80 // pred_check
              _
            $region83: #{vit_block.4} parent=80 // pred_check_branch
              %540 = sbr.rel target = $region85
            $region84: #{vit_block.4} parent=80 // pred_region
              // Predicated region
              $region97: #{vit_block.4} parent=84 // pred_check
                _
              $region98: #{vit_block.4} parent=84 // pred_check_branch
                %562 = sbr.rel (0) target = $region100
              $region99: #{vit_block.4} parent=84 // pred_region
                loop: start=0, step=1, limit=1
                $region101: #{vit_block.4} parent=99 // loop_pre_header
                  _
                $region102: #{vit_block.4} parent=99 // loop_header
                  %s564 = sphi 0, %s568
                  %p565 = scmp.ge.s32.totalorder %s564, 1
                  %s569 = sphi %s529, %s529
                  %s570 = sphi %s536, %s536
                $region103: #{vit_block.4} parent=99 // loop_header_branch
                  %567 = sbr.rel (%p565) target = $region107
                $region104: #{vit_block.4} parent=99 // loop_body
                  _
                $region105: #{vit_block.4} parent=99 // loop_footer
                  %s568 = sadd.s32 1, %s564
                $region106: #{vit_block.4} parent=99 // loop_footer_branch
                  %563 = sbr.rel target = $region102
                $region107: #{vit_block.4} parent=99 // loop_exit
                  _
                %s572 = ssub.s32 16, 1
                loop: start=0, step=1, limit=1
                $region108: #{vit_block.4} parent=99 // loop_pre_header
                  _
                $region109: #{vit_block.4} parent=99 // loop_header
                  %s574 = sphi 0, %s578
                  %p575 = scmp.ge.s32.totalorder %s574, 1
                  %s579 = sphi %s529, %s529
                  %s580 = sphi %s536, %s536
                $region110: #{vit_block.4} parent=99 // loop_header_branch
                  %577 = sbr.rel (%p575) target = $region114
                $region111: #{vit_block.4} parent=99 // loop_body
                  %v581 = vld [vmem:[%s579] sm:%s572]
                  %582 = vst [vmem:[%s580] sm:%s572] %v581
                  %v583 = vld [vmem:[%s579 + $0x4] sm:%s572]
                  %584 = vst [vmem:[%s580 + $0x8] sm:%s572] %v583
                  %v585 = vld [vmem:[%s579 + $0x8] sm:%s572]
                  %586 = vst [vmem:[%s580 + $0x10] sm:%s572] %v585
                  %v587 = vld [vmem:[%s579 + $0xc] sm:%s572]
                  %588 = vst [vmem:[%s580 + $0x18] sm:%s572] %v587
                $region112: #{vit_block.4} parent=99 // loop_footer
                  %s578 = sadd.s32 1, %s574
                $region113: #{vit_block.4} parent=99 // loop_footer_branch
                  %573 = sbr.rel target = $region109
                $region114: #{vit_block.4} parent=99 // loop_exit
                  _
              $region100: #{vit_block.4} parent=84 // pred_fallthru
                _
            $region85: #{vit_block.4} parent=80 // pred_fallthru
              _
            // Predicated region
            $region86: #{vit_block.4} parent=80 // pred_check
              _
            $region87: #{vit_block.4} parent=80 // pred_check_branch
              %542 = sbr.rel (0) target = $region89
            $region88: #{vit_block.4} parent=80 // pred_region
              %s544 = ssub.s32 16, 1
              loop: start=0, step=1, limit=1
              $region90: #{vit_block.4} parent=88 // loop_pre_header
                _
              $region91: #{vit_block.4} parent=88 // loop_header
                %s546 = sphi 0, %s550
                %p547 = scmp.ge.s32.totalorder %s546, 1
                %s551 = sphi %s529, %s529
                %s552 = sphi %s536, %s536
              $region92: #{vit_block.4} parent=88 // loop_header_branch
                %549 = sbr.rel (%p547) target = $region96
              $region93: #{vit_block.4} parent=88 // loop_body
                %v553 = vld [vmem:[%s551] sm:%s544]
                %554 = vst [vmem:[%s552] sm:%s544] %v553
                %v555 = vld [vmem:[%s551 + $0x4] sm:%s544]
                %556 = vst [vmem:[%s552 + $0x8] sm:%s544] %v555
                %v557 = vld [vmem:[%s551 + $0x8] sm:%s544]
                %558 = vst [vmem:[%s552 + $0x10] sm:%s544] %v557
                %v559 = vld [vmem:[%s551 + $0xc] sm:%s544]
                %560 = vst [vmem:[%s552 + $0x18] sm:%s544] %v559
              $region94: #{vit_block.4} parent=88 // loop_footer
                %s550 = sadd.s32 1, %s546
              $region95: #{vit_block.4} parent=88 // loop_footer_branch
                %545 = sbr.rel target = $region91
              $region96: #{vit_block.4} parent=88 // loop_exit
                _
            $region89: #{vit_block.4} parent=80 // pred_fallthru
              _
          $region81: #{vit_block.4} parent=76 // pred_fallthru
            _
          %589 = vnop
        $region77: #{vit_block.4} parent=68 // pred_fallthru
          _
      $region69: #{vit_block.4} parent=5 // pred_fallthru
        _
      %p590 = scmp.le.s32.totalorder 2, %s9
      // Predicated region
      $region115: #{vit_block.4} parent=5 // pred_check
        %p591 = pneg %p590
      $region116: #{vit_block.4} parent=5 // pred_check_branch
        %593 = sbr.rel (%p591) target = $region118
      $region117: #{vit_block.4} parent=5 // pred_region
        %s594 = ssub.s32 %s9, 2
        // Predicated region
        $region119: #{vit_block.4} parent=117 // pred_check
          %p595 = pneg %p132
        $region120: #{vit_block.4} parent=117 // pred_check_branch
          %597 = sbr.rel (%p595) target = $region122
        $region121: #{vit_block.4} parent=117 // pred_region
          %s598 = sand.u32 %s117, 1
          %s599 = sand.u32 %s117, 1
          %s600 = smul.addr %s599, 16
          %s601 = scalar_lea.vmem [#allocation3], %s600
        $region122: #{vit_block.4} parent=117 // pred_fallthru
          _
      $region118: #{vit_block.4} parent=5 // pred_fallthru
        _
    $region6: #{vit_block.4} parent=1 // loop_footer
      %s13 = sadd.s32 1, %s9
    $region7: #{vit_block.4} parent=1 // loop_footer_branch
      %8 = sbr.rel target = $region3
    $region8: #{vit_block.4} parent=1 // loop_exit
      _

// kernel: vit_block.5
$region0: #{vit_block.5}
  #allocation0 [shape = 'u32[]', space=smem, size = 0x4, offset = 0x4, fixed_abs, tag = 'smem constant byte address 0x4 - core index']
  #allocation1 [shape = 'u32[72,128]{1,0:T(1,128)}', space=vmem, size = 0x9000, scoped, tag = 'internal scratch']
  %s0 = inlined_call_operand.vmem [shape: f32[2,16,32], index: 0, kind: input, shape index: {}]
  %s1 = inlined_call_operand.vmem [shape: bf16[2,16,32], index: 1, kind: input, shape index: {}]
  %s2 = inlined_call_operand.vmem [shape: bf16[32,32], index: 2, kind: input, shape index: {}]
  %s3 = inlined_call_operand.vmem [shape: f32[1,32], index: 3, kind: input, shape index: {}]
  %s4 = inlined_call_operand.vmem [shape: f32[1,32], index: 4, kind: input, shape index: {}]
  %s5 = inlined_call_operand.vmem [shape: f32[1,32], index: 5, kind: input, shape index: {}]
  %s6 = inlined_call_operand.vmem [shape: bf16[32,128], index: 6, kind: input, shape index: {}]
  %s7 = inlined_call_operand.vmem [shape: f32[1,128], index: 7, kind: input, shape index: {}]
  %s8 = inlined_call_operand.vmem [shape: bf16[128,32], index: 8, kind: input, shape index: {}]
  %s9 = inlined_call_operand.vmem [shape: f32[1,32], index: 9, kind: input, shape index: {}]
  %s10 = inlined_call_operand.vmem [shape: f32[2,16,32], index: 10, kind: output, shape index: {}]
  %s11 = sld [smem:[#allocation0]]
  $region73: #{vit_block.5} parent=0
    _
  %s13 = ssub.s32 1, %s11
  %s14 = scalar_select 0, %s13, %s11
  loop: start=0, step=1, limit=6
  $region2: #{vit_block.5} parent=0 // loop_pre_header
    _
  $region3: #{vit_block.5} parent=0 // loop_header
    %s16 = sphi 0, %s20
    %p17 = scmp.ge.s32.totalorder %s16, 6
    %s23 = sphi 0, %s35
    %s24 = sphi 0, %s31
    %s25 = sphi 0, %s23
    %s26 = sphi 0, %s24
    %s27 = sphi 0, %s25
    %s28 = sphi 0, %s26
    %s40 = sphi 0, %s42
    %s43 = sphi 0, %s40
    %s44 = sphi 0, %s43
    %s60 = sphi 0, %s44
    %s68 = sphi 0, %s70
    %s71 = sphi 0, %s68
    %s72 = sphi 0, %s71
    %s88 = sphi 0, %s72
    %s92 = sphi 0, %s92
    %s94 = sphi 0, %s92
    %s95 = sphi 0, %s94
    %s109 = sphi 0, %s95
    %s113 = sphi 0, %s113
    %s115 = sphi 0, %s113
    %s116 = sphi 0, %s115
    %s130 = sphi 0, %s116
    %s134 = sphi 0, %s134
    %s136 = sphi 0, %s134
    %s137 = sphi 0, %s136
    %s151 = sphi 0, %s137
    %s155 = sphi 0, %s155
    %s157 = sphi 0, %s155
    %s158 = sphi 0, %s157
    %s172 = sphi 0, %s158
    %s176 = sphi 0, %s176
    %s178 = sphi 0, %s176
    %s179 = sphi 0, %s178
    %s193 = sphi 0, %s179
    %s197 = sphi 0, %s197
    %s199 = sphi 0, %s197
    %s200 = sphi 0, %s199
    %s214 = sphi 0, %s200
    %s218 = sphi 0, %s218
    %s220 = sphi 0, %s218
    %s221 = sphi 0, %s220
    %s235 = sphi 0, %s221
    %s239 = sphi 0, %s239
    %s241 = sphi 0, %s239
    %s242 = sphi 0, %s241
    %s256 = sphi 0, %s242
    %s264 = sphi 0, %s266
    %s267 = sphi 0, %s264
    %s268 = sphi 0, %s267
    %s284 = sphi 0, %s268
  $region4: #{vit_block.5} parent=0 // loop_header_branch
    %19 = sbr.rel (%p17) target = $region8
  $region5: #{vit_block.5} parent=0 // loop_body
    %s21 = ssub.s32 %s16, 1
    %s22 = ssub.s32 %s16, 2
    %s29 = sadd.s32 1, %s24
    %p30 = scmp.ge.s32.totalorder %s29, 2
    %s31 = scalar_select %p30, 0, %s29
    %s32 = sadd.s32 1, %s23
    %s33 = scalar_select %p30, %s32, %s23
    %p34 = scmp.ge.s32.totalorder %s33, 2
    %s35 = scalar_select %p34, 0, %s33
    %s36 = ssub.s32 %s23, %s35
    %s37 = ssub.s32 %s24, %s31
    %s38 = sor.u32 %s36, %s37
    %p39 = scmp.eq.s32.totalorder %s38, 0
    %s41 = sadd.s32 %s40, 1
    %s42 = scalar_select %p39, %s40, %s41
    %p45 = pneg %p39
    %p46 = scmp.eq.s32.totalorder %s16, 3
    %p47 = por %p45, %p46
    %p48 = scmp.ne.s32.totalorder %s40, %s43
    %p49 = scmp.eq.s32.totalorder %s16, 0
    %p50 = por %p48, %p49
    %p51 = scmp.ne.s32.totalorder %s40, %s43
    %p52 = scmp.eq.s32.totalorder %s21, 3
    %p53 = por %p51, %p52
    %p54 = scmp.ne.s32.totalorder %s43, %s44
    %p55 = scmp.eq.s32.totalorder %s21, 0
    %p56 = por %p54, %p55
    %p57 = scmp.ne.s32.totalorder %s43, %s44
    %p58 = scmp.eq.s32.totalorder %s22, 3
    %p59 = por %p57, %p58
    %p61 = scmp.ne.s32.totalorder %s44, %s60
    %p62 = scmp.eq.s32.totalorder %s22, 0
    %p63 = por %p61, %p62
    %s64 = ssub.s32 %s23, %s35
    %s65 = ssub.s32 %s24, %s31
    %s66 = sor.u32 %s64, %s65
    %p67 = scmp.eq.s32.totalorder %s66, 0
    %s69 = sadd.s32 %s68, 1
    %s70 = scalar_select %p67, %s68, %s69
    %p73 = pneg %p67
    %p74 = scmp.eq.s32.totalorder %s16, 3
    %p75 = por %p73, %p74
    %p76 = scmp.ne.s32.totalorder %s68, %s71
    %p77 = scmp.eq.s32.totalorder %s16, 0
    %p78 = por %p76, %p77
    %p79 = scmp.ne.s32.totalorder %s68, %s71
    %p80 = scmp.eq.s32.totalorder %s21, 3
    %p81 = por %p79, %p80
    %p82 = scmp.ne.s32.totalorder %s71, %s72
    %p83 = scmp.eq.s32.totalorder %s21, 0
    %p84 = por %p82, %p83
    %p85 = scmp.ne.s32.totalorder %s71, %s72
    %p86 = scmp.eq.s32.totalorder %s22, 3
    %p87 = por %p85, %p86
    %p89 = scmp.ne.s32.totalorder %s72, %s88
    %p90 = scmp.eq.s32.totalorder %s22, 0
    %p91 = por %p89, %p90
    %s93 = sadd.s32 %s92, 1
    %p96 = scmp.eq.s32.totalorder %s16, 3
    %p97 = scmp.ne.s32.totalorder %s92, %s94
    %p98 = scmp.eq.s32.totalorder %s16, 0
    %p99 = por %p97, %p98
    %p100 = scmp.ne.s32.totalorder %s92, %s94
    %p101 = scmp.eq.s32.totalorder %s21, 3
    %p102 = por %p100, %p101
    %p103 = scmp.ne.s32.totalorder %s94, %s95
    %p104 = scmp.eq.s32.totalorder %s21, 0
    %p105 = por %p103, %p104
    %p106 = scmp.ne.s32.totalorder %s94, %s95
    %p107 = scmp.eq.s32.totalorder %s22, 3
    %p108 = por %p106, %p107
    %p110 = scmp.ne.s32.totalorder %s95, %s109
    %p111 = scmp.eq.s32.totalorder %s22, 0
    %p112 = por %p110, %p111
    %s114 = sadd.s32 %s113, 1
    %p117 = scmp.eq.s32.totalorder %s16, 3
    %p118 = scmp.ne.s32.totalorder %s113, %s115
    %p119 = scmp.eq.s32.totalorder %s16, 0
    %p120 = por %p118, %p119
    %p121 = scmp.ne.s32.totalorder %s113, %s115
    %p122 = scmp.eq.s32.totalorder %s21, 3
    %p123 = por %p121, %p122
    %p124 = scmp.ne.s32.totalorder %s115, %s116
    %p125 = scmp.eq.s32.totalorder %s21, 0
    %p126 = por %p124, %p125
    %p127 = scmp.ne.s32.totalorder %s115, %s116
    %p128 = scmp.eq.s32.totalorder %s22, 3
    %p129 = por %p127, %p128
    %p131 = scmp.ne.s32.totalorder %s116, %s130
    %p132 = scmp.eq.s32.totalorder %s22, 0
    %p133 = por %p131, %p132
    %s135 = sadd.s32 %s134, 1
    %p138 = scmp.eq.s32.totalorder %s16, 3
    %p139 = scmp.ne.s32.totalorder %s134, %s136
    %p140 = scmp.eq.s32.totalorder %s16, 0
    %p141 = por %p139, %p140
    %p142 = scmp.ne.s32.totalorder %s134, %s136
    %p143 = scmp.eq.s32.totalorder %s21, 3
    %p144 = por %p142, %p143
    %p145 = scmp.ne.s32.totalorder %s136, %s137
    %p146 = scmp.eq.s32.totalorder %s21, 0
    %p147 = por %p145, %p146
    %p148 = scmp.ne.s32.totalorder %s136, %s137
    %p149 = scmp.eq.s32.totalorder %s22, 3
    %p150 = por %p148, %p149
    %p152 = scmp.ne.s32.totalorder %s137, %s151
    %p153 = scmp.eq.s32.totalorder %s22, 0
    %p154 = por %p152, %p153
    %s156 = sadd.s32 %s155, 1
    %p159 = scmp.eq.s32.totalorder %s16, 3
    %p160 = scmp.ne.s32.totalorder %s155, %s157
    %p161 = scmp.eq.s32.totalorder %s16, 0
    %p162 = por %p160, %p161
    %p163 = scmp.ne.s32.totalorder %s155, %s157
    %p164 = scmp.eq.s32.totalorder %s21, 3
    %p165 = por %p163, %p164
    %p166 = scmp.ne.s32.totalorder %s157, %s158
    %p167 = scmp.eq.s32.totalorder %s21, 0
    %p168 = por %p166, %p167
    %p169 = scmp.ne.s32.totalorder %s157, %s158
    %p170 = scmp.eq.s32.totalorder %s22, 3
    %p171 = por %p169, %p170
    %p173 = scmp.ne.s32.totalorder %s158, %s172
    %p174 = scmp.eq.s32.totalorder %s22, 0
    %p175 = por %p173, %p174
    %s177 = sadd.s32 %s176, 1
    %p180 = scmp.eq.s32.totalorder %s16, 3
    %p181 = scmp.ne.s32.totalorder %s176, %s178
    %p182 = scmp.eq.s32.totalorder %s16, 0
    %p183 = por %p181, %p182
    %p184 = scmp.ne.s32.totalorder %s176, %s178
    %p185 = scmp.eq.s32.totalorder %s21, 3
    %p186 = por %p184, %p185
    %p187 = scmp.ne.s32.totalorder %s178, %s179
    %p188 = scmp.eq.s32.totalorder %s21, 0
    %p189 = por %p187, %p188
    %p190 = scmp.ne.s32.totalorder %s178, %s179
    %p191 = scmp.eq.s32.totalorder %s22, 3
    %p192 = por %p190, %p191
    %p194 = scmp.ne.s32.totalorder %s179, %s193
    %p195 = scmp.eq.s32.totalorder %s22, 0
    %p196 = por %p194, %p195
    %s198 = sadd.s32 %s197, 1
    %p201 = scmp.eq.s32.totalorder %s16, 3
    %p202 = scmp.ne.s32.totalorder %s197, %s199
    %p203 = scmp.eq.s32.totalorder %s16, 0
    %p204 = por %p202, %p203
    %p205 = scmp.ne.s32.totalorder %s197, %s199
    %p206 = scmp.eq.s32.totalorder %s21, 3
    %p207 = por %p205, %p206
    %p208 = scmp.ne.s32.totalorder %s199, %s200
    %p209 = scmp.eq.s32.totalorder %s21, 0
    %p210 = por %p208, %p209
    %p211 = scmp.ne.s32.totalorder %s199, %s200
    %p212 = scmp.eq.s32.totalorder %s22, 3
    %p213 = por %p211, %p212
    %p215 = scmp.ne.s32.totalorder %s200, %s214
    %p216 = scmp.eq.s32.totalorder %s22, 0
    %p217 = por %p215, %p216
    %s219 = sadd.s32 %s218, 1
    %p222 = scmp.eq.s32.totalorder %s16, 3
    %p223 = scmp.ne.s32.totalorder %s218, %s220
    %p224 = scmp.eq.s32.totalorder %s16, 0
    %p225 = por %p223, %p224
    %p226 = scmp.ne.s32.totalorder %s218, %s220
    %p227 = scmp.eq.s32.totalorder %s21, 3
    %p228 = por %p226, %p227
    %p229 = scmp.ne.s32.totalorder %s220, %s221
    %p230 = scmp.eq.s32.totalorder %s21, 0
    %p231 = por %p229, %p230
    %p232 = scmp.ne.s32.totalorder %s220, %s221
    %p233 = scmp.eq.s32.totalorder %s22, 3
    %p234 = por %p232, %p233
    %p236 = scmp.ne.s32.totalorder %s221, %s235
    %p237 = scmp.eq.s32.totalorder %s22, 0
    %p238 = por %p236, %p237
    %s240 = sadd.s32 %s239, 1
    %p243 = scmp.eq.s32.totalorder %s16, 3
    %p244 = scmp.ne.s32.totalorder %s239, %s241
    %p245 = scmp.eq.s32.totalorder %s16, 0
    %p246 = por %p244, %p245
    %p247 = scmp.ne.s32.totalorder %s239, %s241
    %p248 = scmp.eq.s32.totalorder %s21, 3
    %p249 = por %p247, %p248
    %p250 = scmp.ne.s32.totalorder %s241, %s242
    %p251 = scmp.eq.s32.totalorder %s21, 0
    %p252 = por %p250, %p251
    %p253 = scmp.ne.s32.totalorder %s241, %s242
    %p254 = scmp.eq.s32.totalorder %s22, 3
    %p255 = por %p253, %p254
    %p257 = scmp.ne.s32.totalorder %s242, %s256
    %p258 = scmp.eq.s32.totalorder %s22, 0
    %p259 = por %p257, %p258
    %s260 = ssub.s32 %s23, %s35
    %s261 = ssub.s32 %s24, %s31
    %s262 = sor.u32 %s260, %s261
    %p263 = scmp.eq.s32.totalorder %s262, 0
    %s265 = sadd.s32 %s264, 1
    %s266 = scalar_select %p263, %s264, %s265
    %p269 = pneg %p263
    %p270 = scmp.eq.s32.totalorder %s16, 3
    %p271 = por %p269, %p270
    %p272 = scmp.ne.s32.totalorder %s264, %s267
    %p273 = scmp.eq.s32.totalorder %s16, 0
    %p274 = por %p272, %p273
    %p275 = scmp.ne.s32.totalorder %s264, %s267
    %p276 = scmp.eq.s32.totalorder %s21, 3
    %p277 = por %p275, %p276
    %p278 = scmp.ne.s32.totalorder %s267, %s268
    %p279 = scmp.eq.s32.totalorder %s21, 0
    %p280 = por %p278, %p279
    %p281 = scmp.ne.s32.totalorder %s267, %s268
    %p282 = scmp.eq.s32.totalorder %s22, 3
    %p283 = por %p281, %p282
    %p285 = scmp.ne.s32.totalorder %s268, %s284
    %p286 = scmp.eq.s32.totalorder %s22, 0
    %p287 = por %p285, %p286
    %p288 = scmp.le.s32.totalorder 1, %s16
    %p289 = scmp.lt.s32.totalorder %s16, 5
    %p290 = pnand %p288, %p289
    %p291 = pneg %p290
    // Predicated region
    $region9: #{vit_block.5} parent=5 // pred_check
      _
    $region10: #{vit_block.5} parent=5 // pred_check_branch
      %293 = sbr.rel (%p290) target = $region12
    $region11: #{vit_block.5} parent=5 // pred_region
      %s294 = ssub.s32 %s16, 1
      // Predicated region
      $region13: #{vit_block.5} parent=11 // pred_check
        %p295 = pneg %p105
      $region14: #{vit_block.5} parent=11 // pred_check_branch
        %297 = sbr.rel (%p295) target = $region16
      $region15: #{vit_block.5} parent=11 // pred_region
        _
      $region16: #{vit_block.5} parent=11 // pred_fallthru
        _
      // Predicated region
      $region17: #{vit_block.5} parent=11 // pred_check
        %p298 = pneg %p126
      $region18: #{vit_block.5} parent=11 // pred_check_branch
        %300 = sbr.rel (%p298) target = $region20
      $region19: #{vit_block.5} parent=11 // pred_region
        _
      $region20: #{vit_block.5} parent=11 // pred_fallthru
        _
      // Predicated region
      $region21: #{vit_block.5} parent=11 // pred_check
        %p301 = pneg %p147
      $region22: #{vit_block.5} parent=11 // pred_check_branch
        %303 = sbr.rel (%p301) target = $region24
      $region23: #{vit_block.5} parent=11 // pred_region
        _
      $region24: #{vit_block.5} parent=11 // pred_fallthru
        _
      // Predicated region
      $region25: #{vit_block.5} parent=11 // pred_check
        %p304 = pneg %p168
      $region26: #{vit_block.5} parent=11 // pred_check_branch
        %306 = sbr.rel (%p304) target = $region28
      $region27: #{vit_block.5} parent=11 // pred_region
        _
      $region28: #{vit_block.5} parent=11 // pred_fallthru
        _
      // Predicated region
      $region29: #{vit_block.5} parent=11 // pred_check
        %p307 = pneg %p189
      $region30: #{vit_block.5} parent=11 // pred_check_branch
        %309 = sbr.rel (%p307) target = $region32
      $region31: #{vit_block.5} parent=11 // pred_region
        _
      $region32: #{vit_block.5} parent=11 // pred_fallthru
        _
      // Predicated region
      $region33: #{vit_block.5} parent=11 // pred_check
        %p310 = pneg %p210
      $region34: #{vit_block.5} parent=11 // pred_check_branch
        %312 = sbr.rel (%p310) target = $region36
      $region35: #{vit_block.5} parent=11 // pred_region
        _
      $region36: #{vit_block.5} parent=11 // pred_fallthru
        _
      // Predicated region
      $region37: #{vit_block.5} parent=11 // pred_check
        %p313 = pneg %p231
      $region38: #{vit_block.5} parent=11 // pred_check_branch
        %315 = sbr.rel (%p313) target = $region40
      $region39: #{vit_block.5} parent=11 // pred_region
        _
      $region40: #{vit_block.5} parent=11 // pred_fallthru
        _
      // Predicated region
      $region41: #{vit_block.5} parent=11 // pred_check
        %p316 = pneg %p252
      $region42: #{vit_block.5} parent=11 // pred_check_branch
        %318 = sbr.rel (%p316) target = $region44
      $region43: #{vit_block.5} parent=11 // pred_region
        _
      $region44: #{vit_block.5} parent=11 // pred_fallthru
        _
    $region12: #{vit_block.5} parent=5 // pred_fallthru
      _
    %p319 = scmp.lt.s32.totalorder %s16, 4
    // Predicated region
    $region45: #{vit_block.5} parent=5 // pred_check
      %p320 = pneg %p319
    $region46: #{vit_block.5} parent=5 // pred_check_branch
      %322 = sbr.rel (%p320) target = $region48
    $region47: #{vit_block.5} parent=5 // pred_region
      // Predicated region
      $region49: #{vit_block.5} parent=47 // pred_check
        %p323 = pneg %p50
      $region50: #{vit_block.5} parent=47 // pred_check_branch
        %325 = sbr.rel (%p323) target = $region52
      $region51: #{vit_block.5} parent=47 // pred_region
        %p326 = scmp.lt.s32.totalorder %s23, 1
        %s327 = scalar_select %p326, %s23, 1
        %p328 = scmp.lt.s32.totalorder %s24, 1
        %s329 = scalar_select %p328, %s24, 1
        %s330 = smul.addr %s327, 2
        %s331 = sadd.s32 %s329, %s330
        %s332 = smul.addr %s331, 8
        %s333 = scalar_lea.vmem %s0, %s332
      $region52: #{vit_block.5} parent=47 // pred_fallthru
        _
      // Predicated region
      $region53: #{vit_block.5} parent=47 // pred_check
        %p334 = pneg %p78
      $region54: #{vit_block.5} parent=47 // pred_check_branch
        %336 = sbr.rel (%p334) target = $region56
      $region55: #{vit_block.5} parent=47 // pred_region
        %p337 = scmp.lt.s32.totalorder %s23, 1
        %s338 = scalar_select %p337, %s23, 1
        %p339 = scmp.lt.s32.totalorder %s24, 1
        %s340 = scalar_select %p339, %s24, 1
        %s341 = smul.addr %s338, 2
        %s342 = sadd.s32 %s340, %s341
        %s343 = smul.addr %s342, 4
        %s344 = scalar_lea.vmem %s1, %s343
      $region56: #{vit_block.5} parent=47 // pred_fallthru
        _
    $region48: #{vit_block.5} parent=5 // pred_fallthru
      _
    %p345 = scmp.le.s32.totalorder 1, %s16
    %p346 = scmp.lt.s32.totalorder %s16, 5
    %p347 = pnand %p345, %p346
    %p348 = pneg %p347
    // Predicated region
    $region57: #{vit_block.5} parent=5 // pred_check
      _
    $region58: #{vit_block.5} parent=5 // pred_check_branch
      %350 = sbr.rel (%p347) target = $region60
    $region59: #{vit_block.5} parent=5 // pred_region
      %s351 = ssub.s32 %s16, 1
      %p352 = scmp.lt.s32.totalorder %s25, 1
      %s353 = scalar_select %p352, %s25, 1
      %p354 = scmp.lt.s32.totalorder %s26, 1
      %s355 = scalar_select %p354, %s26, 1
      %s356 = smul.addr %s353, 2
      %s357 = sadd.s32 %s355, %s356
      %s358 = smul.addr %s357, 8
      %s359 = scalar_lea.vmem %s0, %s358
      %p360 = pneg %p56
      %p361 = pneg %p53
      %p362 = scmp.lt.s32.totalorder %s25, 1
      %s363 = scalar_select %p362, %s25, 1
      %p364 = scmp.lt.s32.totalorder %s26, 1
      %s365 = scalar_select %p364, %s26, 1
      %s366 = smul.addr %s363, 2
      %s367 = sadd.s32 %s365, %s366
      %s368 = smul.addr %s367, 4
      %s369 = scalar_lea.vmem %s1, %s368
      %p370 = pneg %p84
      %p371 = pneg %p81
      %p372 = pneg %p105
      %p373 = pneg %p102
      %p374 = pneg %p126
      %p375 = pneg %p123
      %p376 = pneg %p147
      %p377 = pneg %p144
      %p378 = pneg %p168
      %p379 = pneg %p165
      %p380 = pneg %p189
      %p381 = pneg %p186
      %p382 = pneg %p210
      %p383 = pneg %p207
      %p384 = pneg %p231
      %p385 = pneg %p228
      %p386 = pneg %p252
      %p387 = pneg %p249
      %p388 = pneg %p280
      %p389 = pneg %p277
      %p390 = scmp.lt.s32.totalorder %s25, 1
      %s391 = scalar_select %p390, %s25, 1
      %p392 = scmp.lt.s32.totalorder %s26, 1
      %s393 = scalar_select %p392, %s26, 1
      %s394 = smul.addr %s391, 2
      %s395 = sadd.s32 %s393, %s394
      %s396 = smul.addr %s395, 8
      %s397 = scalar_lea.vmem %s10, %s396
      %p398 = scmp.lt.s32.totalorder %s25, 1
      %s399 = scalar_select %p398, %s25, 1
      %p400 = scmp.lt.s32.totalorder %s26, 1
      %s401 = scalar_select %p400, %s26, 1
      %s402 = smul.addr %s399, 2
      %s403 = sadd.s32 %s401, %s402
      %s404 = smul.addr %s403, 8
      %s405 = scalar_lea.vmem %s0, %s404
      %p406 = scmp.lt.s32.totalorder %s25, 1
      %s407 = scalar_select %p406, %s25, 1
      %p408 = scmp.lt.s32.totalorder %s26, 1
      %s409 = scalar_select %p408, %s26, 1
      %s410 = smul.addr %s407, 2
      %s411 = sadd.s32 %s409, %s410
      %s412 = smul.addr %s411, 4
      %s413 = scalar_lea.vmem %s1, %s412
      %p414 = scmp.lt.s32.totalorder %s25, 1
      %s415 = scalar_select %p414, %s25, 1
      %p416 = scmp.lt.s32.totalorder %s26, 1
      %s417 = scalar_select %p416, %s26, 1
      %s418 = smul.addr %s415, 2
      %s419 = sadd.s32 %s417, %s418
      %s420 = smul.addr %s419, 8
      %s421 = scalar_lea.vmem %s10, %s420
      %v423 = vld [vmem:[%s405] sm:$0xff]
      %v424 = vld [vmem:[%s413] sm:$0xf]
      %v425 = vld [vmem:[%s2] sm:$0xf]
      %v426 = vld [vmem:[%s2 + $0x4] sm:$0xf]
      %v427 = vld [vmem:[%s2 + $0x8] sm:$0xf]
      %v428 = vld [vmem:[%s2 + $0xc] sm:$0xf]
      %v429 = vld [vmem:[%s3] sm:$0x1]
      %v431 = vperm.slane %v429, 0
      %v437 = vunpack.c.l.b16 %v425
      %v438 = vunpack.c.l.b16 %v426
      %v439 = vunpack.c.l.b16 %v427
      %v440 = vunpack.c.l.b16 %v428
      %v441 = vpack.c.b16 %v438, %v437
      %v442 = vpack.c.b16 %v440, %v439
      %vm445 = vcmask 261120
      %v447 = vsel %vm445, %v424, 0
      %449 = vmatpush.bf16.msra.mxu0 0
      %450 = vmatpush.bf16.msra.mxu0 0
      %451 = vmatpush.bf16.msra.mxu0 0
      %452 = vmatpush.bf16.msra.mxu0 0
      %453 = vmatpush.bf16.msra.mxu0 0
      %454 = vmatpush.bf16.msra.mxu0 0
      %455 = vmatpush.bf16.msra.mxu0 %v442
      %456 = vmatpush.bf16.msra.mxu0 %v441
      %457 = vmatmul.bf16.gmra.mxu0 %v447
      %v458 = vpop.f32.mrf.mxu0
      %v459 = vadd.f32 %v431, %v458
      %v460 = vpop.f32.mrf.mxu0
      %461 = vdwg.mxu0
      %v462 = vadd.f32 %v423, %v459
      %v463 = vld [vmem:[%s4] sm:$0x1]
      %v464 = vld [vmem:[%s5] sm:$0x1]
      %v465 = vsel %vm445, %v462, 0.0
      %466 = vadd.xlane.f32.xlu0 %v465
      %v467 = vpop.xlane.xlu0 %466
      %v468 = vrcp.pop 32.0
      %v469 = vmul.f32 32.0, %v468
      %v470 = vsub.f32 1.0, %v469
      %v471 = vmul.f32 %v468, %v470
      %v472 = vadd.f32 %v468, %v471
      %vm473 = vweird.f32 %v468
      %v474 = vsel %vm473, %v468, %v472
      %v475 = vmul.f32 %v467, %v474
      %v476 = vsub.f32 %v462, %v475
      %v477 = vmul.f32 %v476, %v476
      %v478 = vsel %vm445, %v477, 0.0
      %479 = vadd.xlane.f32.xlu0 %v478
      %v480 = vpop.xlane.xlu0 %479
      %v481 = vmul.f32 %v480, %v474
      %v482 = vadd.f32 %v481, 1e-05
      %v483 = vrsqrt.pop %v482
      %v484 = vmul.f32 %v483, %v482
      %v485 = vmul.f32 %v484, %v483
      %v486 = vmul.f32 0.5, %v485
      %v487 = vsub.f32 1.5, %v486
      %v488 = vmul.f32 %v483, %v487
      %vm489 = vweird.f32 %v482
      %vm490 = vweird.f32 %v483
      %vm491 = vmor %vm489, %vm490
      %v492 = vsel %vm491, %v483, %v488
      %v493 = vmul.f32 %v476, %v492
      %v495 = vperm.slane %v463, 0
      %v497 = vmul.f32 %v493, %v495
      %v499 = vperm.slane %v464, 0
      %v501 = vadd.f32 %v497, %v499
      %v502 = vpack.c.bf16 %v501, %v501
      %v503 = vld [vmem:[%s6] sm:$0xf]
      %v504 = vld [vmem:[%s6 + $0x4] sm:$0xf]
      %v505 = vld [vmem:[%s6 + $0x8] sm:$0xf]
      %v506 = vld [vmem:[%s6 + $0xc] sm:$0xf]
      %v507 = vld [vmem:[%s7] sm:$0x1]
      %v509 = vperm.slane %v507, 0
      %v515 = vunpack.c.l.b16 %v503
      %v516 = vunpack.c.l.b16 %v504
      %v517 = vunpack.c.l.b16 %v505
      %v518 = vunpack.c.l.b16 %v506
      %v519 = vpack.c.b16 %v516, %v515
      %v520 = vpack.c.b16 %v518, %v517
      %v524 = vsel %vm445, %v502, 0
      %526 = vmatpush.bf16.msra.mxu0 0
      %527 = vmatpush.bf16.msra.mxu0 0
      %528 = vmatpush.bf16.msra.mxu0 0
      %529 = vmatpush.bf16.msra.mxu0 0
      %530 = vmatpush.bf16.msra.mxu0 0
      %531 = vmatpush.bf16.msra.mxu0 0
      %532 = vmatpush.bf16.msra.mxu0 %v520
      %533 = vmatpush.bf16.msra.mxu0 %v519
      %534 = vmatmul.bf16.gmra.mxu0 %v524
      %v535 = vpop.f32.mrf.mxu0
      %v536 = vadd.f32 %v509, %v535
      %v537 = vpop.f32.mrf.mxu0
      %538 = vdwg.mxu0
      %v539 = vmul.f32 %v536, 0.5
      %v540 = vmul.f32 %v536, 0.70710677
      %v541 = vmul.f32 %v540, %v540
      %v542 = vmin.f32 16.0, %v541
      %v543 = vmul.f32 %v542, 2.1237322e-06
      %v544 = vadd.f32 %v543, 0.00028619796
      %v545 = vmul.f32 %v542, %v544
      %v546 = vadd.f32 %v545, 0.0036580483
      %v547 = vmul.f32 %v542, %v546
      %v548 = vadd.f32 %v547, 0.05243302
      %v549 = vmul.f32 %v542, %v548
      %v550 = vadd.f32 %v549, 0.18741608
      %v551 = vmul.f32 %v542, %v550
      %v552 = vadd.f32 %v551, 1.1283791
      %v553 = vmul.f32 %v540, %v552
      %v554 = vmul.f32 %v542, 3.8918573e-05
      %v555 = vadd.f32 %v554, 0.001143296
      %v556 = vmul.f32 %v542, %v555
      %v557 = vadd.f32 %v556, 0.014752088
      %v558 = vmul.f32 %v542, %v557
      %v559 = vadd.f32 %v558, 0.112945676
      %v560 = vmul.f32 %v542, %v559
      %v561 = vadd.f32 %v560, 0.4994258
      %v562 = vmul.f32 %v542, %v561
      %v563 = vadd.f32 %v562, 1.0
      %v564 = vrcp.pop %v563
      %v565 = vmul.f32 %v563, %v564
      %v566 = vsub.f32 1.0, %v565
      %v567 = vmul.f32 %v564, %v566
      %v568 = vadd.f32 %v564, %v567
      %vm569 = vweird.f32 %v563
      %vm570 = vweird.f32 %v564
      %vm571 = vmor %vm569, %vm570
      %v572 = vsel %vm571, %v564, %v568
      %v573 = vand.u32 2147483647, %v563
      %vm574 = vcmp.eq.f32.partialorder %v573, 8.507059e+37
      %v575 = vand.u32 %v563, 2147483648
      %v576 = vor.u32 1.1754944e-38, %v575
      %v577 = vsel %vm574, %v576, %v572
      %v578 = vmul.f32 %v553, %v577
      %v579 = vmin.f32 %v578, 1.0
      %v580 = vmax.f32 %v579, -1.0
      %v581 = vadd.f32 %v580, 1.0
      %v582 = vmul.f32 %v539, %v581
      %v583 = vpack.c.bf16 %v582, %v582
      %v584 = vld [vmem:[%s8] sm:$0xf]
      %v585 = vld [vmem:[%s8 + $0x4] sm:$0xf]
      %v586 = vld [vmem:[%s8 + $0x8] sm:$0xf]
      %v587 = vld [vmem:[%s8 + $0xc] sm:$0xf]
      %v588 = vld [vmem:[%s8 + $0x10] sm:$0xf]
      %v589 = vld [vmem:[%s8 + $0x14] sm:$0xf]
      %v590 = vld [vmem:[%s8 + $0x18] sm:$0xf]
      %v591 = vld [vmem:[%s8 + $0x1c] sm:$0xf]
      %v592 = vld [vmem:[%s8 + $0x20] sm:$0xf]
      %v593 = vld [vmem:[%s8 + $0x24] sm:$0xf]
      %v594 = vld [vmem:[%s8 + $0x28] sm:$0xf]
      %v595 = vld [vmem:[%s8 + $0x2c] sm:$0xf]
      %v596 = vld [vmem:[%s8 + $0x30] sm:$0xf]
      %v597 = vld [vmem:[%s8 + $0x34] sm:$0xf]
      %v598 = vld [vmem:[%s8 + $0x38] sm:$0xf]
      %v599 = vld [vmem:[%s8 + $0x3c] sm:$0xf]
      %v600 = vld [vmem:[%s9] sm:$0x1]
      %v602 = vperm.slane %v600, 0
      %v620 = vunpack.c.l.b16 %v584
      %v621 = vunpack.c.l.b16 %v585
      %v622 = vunpack.c.l.b16 %v586
      %v623 = vunpack.c.l.b16 %v587
      %v624 = vunpack.c.l.b16 %v588
      %v625 = vunpack.c.l.b16 %v589
      %v626 = vunpack.c.l.b16 %v590
      %v627 = vunpack.c.l.b16 %v591
      %v628 = vunpack.c.l.b16 %v592
      %v629 = vunpack.c.l.b16 %v593
      %v630 = vunpack.c.l.b16 %v594
      %v631 = vunpack.c.l.b16 %v595
      %v632 = vunpack.c.l.b16 %v596
      %v633 = vunpack.c.l.b16 %v597
      %v634 = vunpack.c.l.b16 %v598
      %v635 = vunpack.c.l.b16 %v599
      %v636 = vpack.c.b16 %v621, %v620
      %v637 = vpack.c.b16 %v623, %v622
      %v638 = vpack.c.b16 %v625, %v624
      %v639 = vpack.c.b16 %v627, %v626
      %v640 = vpack.c.b16 %v629, %v628
      %v641 = vpack.c.b16 %v631, %v630
      %v642 = vpack.c.b16 %v633, %v632
      %v643 = vpack.c.b16 %v635, %v634
      %652 = vmatpush.bf16.msra.mxu0 %v643
      %653 = vmatpush.bf16.msra.mxu0 %v642
      %654 = vmatpush.bf16.msra.mxu0 %v641
      %655 = vmatpush.bf16.msra.mxu0 %v640
      %656 = vmatpush.bf16.msra.mxu0 %v639
      %657 = vmatpush.bf16.msra.mxu0 %v638
      %658 = vmatpush.bf16.msra.mxu0 %v637
      %659 = vmatpush.bf16.msra.mxu0 %v636
      %660 = vmatmul.bf16.gmra.mxu0 %v583
      %v661 = vpop.f32.mrf.mxu0
      %v662 = vadd.f32 %v602, %v661
      %v663 = vpop.f32.mrf.mxu0
      %664 = vdwg.mxu0
      %v665 = vadd.f32 %v462, %v662
      %666 = vst.msk [vmem:[%s421] sm:$0xff] %vm445, %v665
      %p667 = scmp.lt.s32.totalorder %s25, 1
      %s668 = scalar_select %p667, %s25, 1
      %p669 = scmp.lt.s32.totalorder %s26, 1
      %s670 = scalar_select %p669, %s26, 1
      %s671 = smul.addr %s668, 2
      %s672 = sadd.s32 %s670, %s671
      %s673 = smul.addr %s672, 8
      %s674 = scalar_lea.vmem %s10, %s673
      // Predicated region
      $region61: #{vit_block.5} parent=59 // pred_check
        %p675 = pneg %p277
      $region62: #{vit_block.5} parent=59 // pred_check_branch
        %677 = sbr.rel (%p675) target = $region64
      $region63: #{vit_block.5} parent=59 // pred_region
        _
      $region64: #{vit_block.5} parent=59 // pred_fallthru
        _
    $region60: #{vit_block.5} parent=5 // pred_fallthru
      _
    %p678 = scmp.le.s32.totalorder 2, %s16
    // Predicated region
    $region65: #{vit_block.5} parent=5 // pred_check
      %p679 = pneg %p678
    $region66: #{vit_block.5} parent=5 // pred_check_branch
      %681 = sbr.rel (%p679) target = $region68
    $region67: #{vit_block.5} parent=5 // pred_region
      %s682 = ssub.s32 %s16, 2
      // Predicated region
      $region69: #{vit_block.5} parent=67 // pred_check
        %p683 = pneg %p283
      $region70: #{vit_block.5} parent=67 // pred_check_branch
        %685 = sbr.rel (%p683) target = $region72
      $region71: #{vit_block.5} parent=67 // pred_region
        %p686 = scmp.lt.s32.totalorder %s27, 1
        %s687 = scalar_select %p686, %s27, 1
        %p688 = scmp.lt.s32.totalorder %s28, 1
        %s689 = scalar_select %p688, %s28, 1
        %s690 = smul.addr %s687, 2
        %s691 = sadd.s32 %s689, %s690
        %s692 = smul.addr %s691, 8
        %s693 = scalar_lea.vmem %s10, %s692
      $region72: #{vit_block.5} parent=67 // pred_fallthru
        _
    $region68: #{vit_block.5} parent=5 // pred_fallthru
      _
  $region6: #{vit_block.5} parent=0 // loop_footer
    %s20 = sadd.s32 1, %s16
  $region7: #{vit_block.5} parent=0 // loop_footer_branch
    %15 = sbr.rel target = $region3
  $region8: #{vit_block.5} parent=0 // loop_exit
    _

</llo_original>
